<compile_context>
chip_gen: v7x
topology: tpu7x:2x2x1
jax: 0.10.0
libtpu: 0.0.40
codegen_flags: <defaults>
</compile_context>

<pallas_src>
import functools
import math

import jax
import jax.numpy as jnp
from jax.experimental import pallas as pl
from jax.experimental.pallas import tpu as pltpu

NUM_HEADS = 4


def _multistream_kernel(S, T, H,
                        x_ref, ws_ref, bs_ref,
                        wq_ref, bq_ref, wk_ref, bk_ref, wv_ref, bv_ref,
                        wo_ref, bo_ref, agg_ref, aggT_ref,
                        wf_ref, bf_ref, wc_ref, bc_ref,
                        out_ref):
    TB = x_ref.shape[0]
    ST = S * T
    Dh = T // H
    scale = 1.0 / math.sqrt(Dh)

    # ---- stem: all streams as one block-diagonal lane-dense matmul + ReLU ----
    x = x_ref[...]                                               # (TB, S*F) bf16
    h = jnp.maximum(
        jnp.dot(x, ws_ref[...], preferred_element_type=jnp.float32)
        + bs_ref[...], 0.0)                                      # (TB, S*T) f32

    # ---- mutual multi-head self-attention across the stream axis -------------
    hb = h.astype(jnp.bfloat16)
    q = jnp.dot(hb, wq_ref[...], preferred_element_type=jnp.float32) + bq_ref[...]
    k = jnp.dot(hb, wk_ref[...], preferred_element_type=jnp.float32) + bk_ref[...]
    v = jnp.dot(hb, wv_ref[...], preferred_element_type=jnp.float32) + bv_ref[...]

    # Scores for key-offset r: roll K/V by r whole streams along the lane axis
    # (shift is a multiple of T so head sub-blocks stay aligned), multiply
    # elementwise with Q and reduce each (stream, head) lane group with one
    # small matmul against the 0/1 aggregation matrix agg (S*T, S*H).
    # Lane dim stays 128 (or S*H) everywhere; no Dh-sized lane slicing.
    sc = []
    v_roll = []
    for r in range(S):
        k_r = pltpu.roll(k, shift=r * T, axis=1) if r else k
        v_r = pltpu.roll(v, shift=r * T, axis=1) if r else v
        v_roll.append(v_r)
        sc.append(jnp.dot(q * k_r, agg_ref[...],
                          preferred_element_type=jnp.float32) * scale)

    m = sc[0]
    for r in range(1, S):
        m = jnp.maximum(m, sc[r])
    p = [jnp.exp(s_r - m) for s_r in sc]                          # (TB, S*H) each
    denom = p[0]
    for r in range(1, S):
        denom = denom + p[r]
    inv = pl.reciprocal(denom, approx=True)                       # EUP slot

    ctx = jnp.zeros((TB, ST), jnp.float32)
    for r in range(S):
        attn_lanes = jnp.dot(p[r] * inv, aggT_ref[...],
                             preferred_element_type=jnp.float32)  # (TB, S*T)
        ctx = ctx + attn_lanes * v_roll[r]

    # output projection (block-diag Wo == per-stream concat-heads @ Wo) + residual
    o = jnp.dot(ctx.astype(jnp.bfloat16), wo_ref[...],
                preferred_element_type=jnp.float32) + bo_ref[...]
    y = h + o                                                     # (TB, S*T)

    # ---- fusion: concat-streams + Linear + ReLU (streams already on lanes) ----
    fused = jnp.maximum(
        jnp.dot(y.astype(jnp.bfloat16), wf_ref[...],
                preferred_element_type=jnp.float32) + bf_ref[...], 0.0)

    # ---- classifier (C padded to 128 lanes -> unmasked store) -----------------
    out_ref[...] = jnp.dot(fused.astype(jnp.bfloat16), wc_ref[...],
                           preferred_element_type=jnp.float32) + bc_ref[...]


def _round_up(n, m):
    return ((n + m - 1) // m) * m


def _pack_params(params, num_heads):
    S, F, T = params["w_stem"].shape
    C = params["wc"].shape[1]
    H = num_heads
    Dh = T // H
    ST, SH = S * T, S * H
    C_pad = _round_up(C, 128)
    f32, bf16 = jnp.float32, jnp.bfloat16

    def bd_per_stream(w):                       # (S, a, b) -> block-diag (S*a, S*b)
        a, b = w.shape[1], w.shape[2]
        out = jnp.zeros((S * a, S * b), w.dtype)
        for s in range(S):
            out = out.at[s * a:(s + 1) * a, s * b:(s + 1) * b].set(w[s])
        return out

    eye_s = jnp.eye(S, dtype=f32)

    def bd_shared(w):                           # (a, b) -> kron(I_S, w)
        return jnp.kron(eye_s, w.astype(f32))

    ws_bd = bd_per_stream(params["w_stem"]).astype(bf16)          # (S*F, S*T)
    bs = params["b_stem"].reshape(1, ST).astype(f32)
    wq_bd = bd_shared(params["wq"]).astype(bf16)
    wk_bd = bd_shared(params["wk"]).astype(bf16)
    wv_bd = bd_shared(params["wv"]).astype(bf16)
    wo_bd = bd_shared(params["wo"]).astype(bf16)
    bq = jnp.tile(params["bq"], (1, S)).astype(f32)
    bk = jnp.tile(params["bk"], (1, S)).astype(f32)
    bv = jnp.tile(params["bv"], (1, S)).astype(f32)
    bo = jnp.tile(params["bo"], (1, S)).astype(f32)

    # (stream, head) lane-group aggregation: agg[s*T + h*Dh + d, s*H + h] = 1
    j = jnp.arange(ST)
    g_of_j = (j // T) * H + ((j % T) // Dh)
    agg = (g_of_j[:, None] == jnp.arange(SH)[None, :]).astype(f32)  # (S*T, S*H)
    aggT = agg.T                                                    # (S*H, S*T)

    wf = params["wf"].reshape(ST, T).astype(bf16)
    bf = params["bf"].astype(f32)
    wc = jnp.zeros((T, C_pad), f32).at[:, :C].set(params["wc"]).astype(bf16)
    bc = jnp.zeros((1, C_pad), f32).at[:, :C].set(params["bc"])

    return (ws_bd, bs, wq_bd, bq, wk_bd, bk, wv_bd, bv,
            wo_bd, bo, agg, aggT, wf, bf, wc, bc), C_pad


def multistream_forward(x, params, num_heads=NUM_HEADS, batch_tile=256):
    B, S, F = x.shape
    T = params["w_stem"].shape[2]
    C = params["wc"].shape[1]
    ST = S * T

    weights, C_pad = _pack_params(params, num_heads)

    # Batch tile: >=256 rows for real batches (fills the MXU M dim and
    # amortizes per-step grid overhead), a multiple of 8 sublanes when the
    # batch itself is tiny.  VMEM use per step is well under the 32 MiB
    # scoped default on all of v5e/v6e/v7x.
    TB = batch_tile if B >= batch_tile else _round_up(B, 8)
    B_pad = _round_up(B, TB)

    x_flat = x.reshape(B, S * F).astype(jnp.bfloat16)
    if B_pad != B:
        x_flat = jnp.pad(x_flat, ((0, B_pad - B), (0, 0)))

    const2d = lambda i: (0, 0)                 # weights: resident, never re-DMA'd
    w_specs = [pl.BlockSpec(w.shape, const2d) for w in weights]

    kernel = functools.partial(_multistream_kernel, S, T, num_heads)

    flops = 2 * B_pad * (S * F * T + 5 * ST * ST + ST * T + T * C_pad
                         + 2 * S * ST * S * num_heads)
    bytes_accessed = (x_flat.size * x_flat.dtype.itemsize
                      + sum(int(w.size) * w.dtype.itemsize for w in weights)
                      + B_pad * C_pad * 4)
    cost = pl.CostEstimate(flops=int(flops),
                           transcendentals=int(B_pad * S * S * num_heads),
                           bytes_accessed=int(bytes_accessed))

    out = pl.pallas_call(
        kernel,
        out_shape=jax.ShapeDtypeStruct((B_pad, C_pad), jnp.float32),
        grid=(B_pad // TB,),
        in_specs=[pl.BlockSpec((TB, S * F), lambda i: (i, 0))] + w_specs,
        out_specs=pl.BlockSpec((TB, C_pad), lambda i: (i, 0)),
        compiler_params=pltpu.CompilerParams(
            dimension_semantics=("parallel",)),      # megacore split on v7x
        cost_estimate=cost,
    )(x_flat, *weights)
    return out[:B, :C]


def init_params(key, S, F, T, C):
    ks = jax.random.split(key, 14)

    def u(k, shape, fan_in):
        bound = 1.0 / math.sqrt(fan_in)
        return jax.random.uniform(k, shape, jnp.float32, -bound, bound)

    return dict(
        w_stem=u(ks[0], (S, F, T), F), b_stem=u(ks[1], (S, T), F),
        wq=u(ks[2], (T, T), T), bq=u(ks[3], (1, T), T),
        wk=u(ks[4], (T, T), T), bk=u(ks[5], (1, T), T),
        wv=u(ks[6], (T, T), T), bv=u(ks[7], (1, T), T),
        wo=u(ks[8], (T, T), T), bo=u(ks[9], (1, T), T),
        wf=u(ks[10], (S, T, T), S * T), bf=u(ks[11], (1, T), S * T),
        wc=u(ks[12], (T, C), T), bc=u(ks[13], (1, C), T),
    )


if __name__ == "__main__":
    # num_streams=4, batch=2, in_features=16, transfer_features=32, num_classes=8
    B, S, F, T, C = 2, 4, 16, 32, 8
    key = jax.random.PRNGKey(0)
    kx, kp = jax.random.split(key)
    x = jax.random.normal(kx, (B, S, F), dtype=jnp.float32)
    params = init_params(kp, S, F, T, C)

    out = multistream_forward(x, params)
    out = jax.block_until_ready(out)
    assert out.shape == (B, C) and out.dtype == jnp.float32
    assert bool(jnp.all(jnp.isfinite(out)))
    print("KERNEL_OK")
</pallas_src>

<mosaic_0001>
module attributes {stable_mosaic.version = 11 : i64} {
  func.func @_multistream_kernel(%arg0: i32, %arg1: memref<8x64xbf16, #tpu.memory_space<vmem>>, %arg2: memref<64x128xbf16, #tpu.memory_space<vmem>>, %arg3: memref<1x128xf32, #tpu.memory_space<vmem>>, %arg4: memref<128x128xbf16, #tpu.memory_space<vmem>>, %arg5: memref<1x128xf32, #tpu.memory_space<vmem>>, %arg6: memref<128x128xbf16, #tpu.memory_space<vmem>>, %arg7: memref<1x128xf32, #tpu.memory_space<vmem>>, %arg8: memref<128x128xbf16, #tpu.memory_space<vmem>>, %arg9: memref<1x128xf32, #tpu.memory_space<vmem>>, %arg10: memref<128x128xbf16, #tpu.memory_space<vmem>>, %arg11: memref<1x128xf32, #tpu.memory_space<vmem>>, %arg12: memref<128x16xf32, #tpu.memory_space<vmem>>, %arg13: memref<16x128xf32, #tpu.memory_space<vmem>>, %arg14: memref<128x32xbf16, #tpu.memory_space<vmem>>, %arg15: memref<1x32xf32, #tpu.memory_space<vmem>>, %arg16: memref<32x128xbf16, #tpu.memory_space<vmem>>, %arg17: memref<1x128xf32, #tpu.memory_space<vmem>>, %arg18: memref<8x128xf32, #tpu.memory_space<vmem>>) attributes {dimension_semantics = [#tpu.dimension_semantics<parallel>], iteration_bounds = array<i64: 1>, scalar_prefetch = 0 : i64, scratch_operands = 0 : i64, tpu.core_type = #tpu.core_type<tc>, window_params = [{transform_indices = @transform_0, window_bounds = array<i64: 8, 64>}, {pipeline_mode = #tpu.pipeline_mode<synchronous>, transform_indices = @transform_1, window_bounds = array<i64: 64, 128>}, {pipeline_mode = #tpu.pipeline_mode<synchronous>, transform_indices = @transform_2, window_bounds = array<i64: 1, 128>}, {pipeline_mode = #tpu.pipeline_mode<synchronous>, transform_indices = @transform_3, window_bounds = array<i64: 128, 128>}, {pipeline_mode = #tpu.pipeline_mode<synchronous>, transform_indices = @transform_4, window_bounds = array<i64: 1, 128>}, {pipeline_mode = #tpu.pipeline_mode<synchronous>, transform_indices = @transform_5, window_bounds = array<i64: 128, 128>}, {pipeline_mode = #tpu.pipeline_mode<synchronous>, transform_indices = @transform_6, window_bounds = array<i64: 1, 128>}, {pipeline_mode = #tpu.pipeline_mode<synchronous>, transform_indices = @transform_7, window_bounds = array<i64: 128, 128>}, {pipeline_mode = #tpu.pipeline_mode<synchronous>, transform_indices = @transform_8, window_bounds = array<i64: 1, 128>}, {pipeline_mode = #tpu.pipeline_mode<synchronous>, transform_indices = @transform_9, window_bounds = array<i64: 128, 128>}, {pipeline_mode = #tpu.pipeline_mode<synchronous>, transform_indices = @transform_10, window_bounds = array<i64: 1, 128>}, {pipeline_mode = #tpu.pipeline_mode<synchronous>, transform_indices = @transform_11, window_bounds = array<i64: 128, 16>}, {pipeline_mode = #tpu.pipeline_mode<synchronous>, transform_indices = @transform_12, window_bounds = array<i64: 16, 128>}, {pipeline_mode = #tpu.pipeline_mode<synchronous>, transform_indices = @transform_13, window_bounds = array<i64: 128, 32>}, {pipeline_mode = #tpu.pipeline_mode<synchronous>, transform_indices = @transform_14, window_bounds = array<i64: 1, 32>}, {pipeline_mode = #tpu.pipeline_mode<synchronous>, transform_indices = @transform_15, window_bounds = array<i64: 32, 128>}, {pipeline_mode = #tpu.pipeline_mode<synchronous>, transform_indices = @transform_16, window_bounds = array<i64: 1, 128>}, {transform_indices = @transform_17, window_bounds = array<i64: 8, 128>}]} {
    %c0 = arith.constant 0 : index
    %c0_0 = arith.constant 0 : index
    %0 = vector.load %arg1[%c0, %c0_0] : memref<8x64xbf16, #tpu.memory_space<vmem>>, vector<8x64xbf16>
    %c0_1 = arith.constant 0 : index
    %c0_2 = arith.constant 0 : index
    %1 = vector.load %arg2[%c0_1, %c0_2] : memref<64x128xbf16, #tpu.memory_space<vmem>>, vector<64x128xbf16>
    %cst = arith.constant dense<0.000000e+00> : vector<8x128xf32>
    %2 = tpu.matmul %0, %1, %cst {dimension_numbers = #tpu.dot_dimension_numbers<[1], [0], [0], [1], [0, 0, 1, 1], [], []>} : vector<8x64xbf16>, vector<64x128xbf16>, vector<8x128xf32> -> vector<8x128xf32>
    %c0_3 = arith.constant 0 : index
    %c0_4 = arith.constant 0 : index
    %3 = vector.load %arg3[%c0_3, %c0_4] : memref<1x128xf32, #tpu.memory_space<vmem>>, vector<1x128xf32>
    %4 = vector.broadcast %3 : vector<1x128xf32> to vector<8x128xf32>
    %5 = arith.addf %2, %4 : vector<8x128xf32>
    %cst_5 = arith.constant 0.000000e+00 : f32
    %6 = vector.broadcast %cst_5 : f32 to vector<8x128xf32>
    %7 = arith.maximumf %5, %6 : vector<8x128xf32>
    %8 = arith.truncf %7 : vector<8x128xf32> to vector<8x128xbf16>
    %c0_6 = arith.constant 0 : index
    %c0_7 = arith.constant 0 : index
    %9 = vector.load %arg4[%c0_6, %c0_7] : memref<128x128xbf16, #tpu.memory_space<vmem>>, vector<128x128xbf16>
    %cst_8 = arith.constant dense<0.000000e+00> : vector<8x128xf32>
    %10 = tpu.matmul %8, %9, %cst_8 {dimension_numbers = #tpu.dot_dimension_numbers<[1], [0], [0], [1], [0, 0, 1, 1], [], []>} : vector<8x128xbf16>, vector<128x128xbf16>, vector<8x128xf32> -> vector<8x128xf32>
    %c0_9 = arith.constant 0 : index
    %c0_10 = arith.constant 0 : index
    %11 = vector.load %arg5[%c0_9, %c0_10] : memref<1x128xf32, #tpu.memory_space<vmem>>, vector<1x128xf32>
    %12 = vector.broadcast %11 : vector<1x128xf32> to vector<8x128xf32>
    %13 = arith.addf %10, %12 : vector<8x128xf32>
    %c0_11 = arith.constant 0 : index
    %c0_12 = arith.constant 0 : index
    %14 = vector.load %arg6[%c0_11, %c0_12] : memref<128x128xbf16, #tpu.memory_space<vmem>>, vector<128x128xbf16>
    %cst_13 = arith.constant dense<0.000000e+00> : vector<8x128xf32>
    %15 = tpu.matmul %8, %14, %cst_13 {dimension_numbers = #tpu.dot_dimension_numbers<[1], [0], [0], [1], [0, 0, 1, 1], [], []>} : vector<8x128xbf16>, vector<128x128xbf16>, vector<8x128xf32> -> vector<8x128xf32>
    %c0_14 = arith.constant 0 : index
    %c0_15 = arith.constant 0 : index
    %16 = vector.load %arg7[%c0_14, %c0_15] : memref<1x128xf32, #tpu.memory_space<vmem>>, vector<1x128xf32>
    %17 = vector.broadcast %16 : vector<1x128xf32> to vector<8x128xf32>
    %18 = arith.addf %15, %17 : vector<8x128xf32>
    %c0_16 = arith.constant 0 : index
    %c0_17 = arith.constant 0 : index
    %19 = vector.load %arg8[%c0_16, %c0_17] : memref<128x128xbf16, #tpu.memory_space<vmem>>, vector<128x128xbf16>
    %cst_18 = arith.constant dense<0.000000e+00> : vector<8x128xf32>
    %20 = tpu.matmul %8, %19, %cst_18 {dimension_numbers = #tpu.dot_dimension_numbers<[1], [0], [0], [1], [0, 0, 1, 1], [], []>} : vector<8x128xbf16>, vector<128x128xbf16>, vector<8x128xf32> -> vector<8x128xf32>
    %c0_19 = arith.constant 0 : index
    %c0_20 = arith.constant 0 : index
    %21 = vector.load %arg9[%c0_19, %c0_20] : memref<1x128xf32, #tpu.memory_space<vmem>>, vector<1x128xf32>
    %22 = vector.broadcast %21 : vector<1x128xf32> to vector<8x128xf32>
    %23 = arith.addf %20, %22 : vector<8x128xf32>
    %24 = arith.mulf %13, %18 : vector<8x128xf32>
    %c0_21 = arith.constant 0 : index
    %c0_22 = arith.constant 0 : index
    %25 = vector.load %arg12[%c0_21, %c0_22] : memref<128x16xf32, #tpu.memory_space<vmem>>, vector<128x16xf32>
    %cst_23 = arith.constant dense<0.000000e+00> : vector<8x16xf32>
    %26 = tpu.matmul %24, %25, %cst_23 {dimension_numbers = #tpu.dot_dimension_numbers<[1], [0], [0], [1], [0, 0, 1, 1], [], []>} : vector<8x128xf32>, vector<128x16xf32>, vector<8x16xf32> -> vector<8x16xf32>
    %cst_24 = arith.constant 0.353553385 : f32
    %27 = vector.broadcast %cst_24 : f32 to vector<8x16xf32>
    %28 = arith.mulf %26, %27 : vector<8x16xf32>
    %c32_i32 = arith.constant 32 : i32
    %29 = tpu.dynamic_rotate %18 by %c32_i32 dim 1 : vector<8x128xf32>, i32 -> vector<8x128xf32>
    %c32_i32_25 = arith.constant 32 : i32
    %30 = tpu.dynamic_rotate %23 by %c32_i32_25 dim 1 : vector<8x128xf32>, i32 -> vector<8x128xf32>
    %31 = arith.mulf %13, %29 : vector<8x128xf32>
    %c0_26 = arith.constant 0 : index
    %c0_27 = arith.constant 0 : index
    %32 = vector.load %arg12[%c0_26, %c0_27] : memref<128x16xf32, #tpu.memory_space<vmem>>, vector<128x16xf32>
    %cst_28 = arith.constant dense<0.000000e+00> : vector<8x16xf32>
    %33 = tpu.matmul %31, %32, %cst_28 {dimension_numbers = #tpu.dot_dimension_numbers<[1], [0], [0], [1], [0, 0, 1, 1], [], []>} : vector<8x128xf32>, vector<128x16xf32>, vector<8x16xf32> -> vector<8x16xf32>
    %cst_29 = arith.constant 0.353553385 : f32
    %34 = vector.broadcast %cst_29 : f32 to vector<8x16xf32>
    %35 = arith.mulf %33, %34 : vector<8x16xf32>
    %c64_i32 = arith.constant 64 : i32
    %36 = tpu.dynamic_rotate %18 by %c64_i32 dim 1 : vector<8x128xf32>, i32 -> vector<8x128xf32>
    %c64_i32_30 = arith.constant 64 : i32
    %37 = tpu.dynamic_rotate %23 by %c64_i32_30 dim 1 : vector<8x128xf32>, i32 -> vector<8x128xf32>
    %38 = arith.mulf %13, %36 : vector<8x128xf32>
    %c0_31 = arith.constant 0 : index
    %c0_32 = arith.constant 0 : index
    %39 = vector.load %arg12[%c0_31, %c0_32] : memref<128x16xf32, #tpu.memory_space<vmem>>, vector<128x16xf32>
    %cst_33 = arith.constant dense<0.000000e+00> : vector<8x16xf32>
    %40 = tpu.matmul %38, %39, %cst_33 {dimension_numbers = #tpu.dot_dimension_numbers<[1], [0], [0], [1], [0, 0, 1, 1], [], []>} : vector<8x128xf32>, vector<128x16xf32>, vector<8x16xf32> -> vector<8x16xf32>
    %cst_34 = arith.constant 0.353553385 : f32
    %41 = vector.broadcast %cst_34 : f32 to vector<8x16xf32>
    %42 = arith.mulf %40, %41 : vector<8x16xf32>
    %c96_i32 = arith.constant 96 : i32
    %43 = tpu.dynamic_rotate %18 by %c96_i32 dim 1 : vector<8x128xf32>, i32 -> vector<8x128xf32>
    %c96_i32_35 = arith.constant 96 : i32
    %44 = tpu.dynamic_rotate %23 by %c96_i32_35 dim 1 : vector<8x128xf32>, i32 -> vector<8x128xf32>
    %45 = arith.mulf %13, %43 : vector<8x128xf32>
    %c0_36 = arith.constant 0 : index
    %c0_37 = arith.constant 0 : index
    %46 = vector.load %arg12[%c0_36, %c0_37] : memref<128x16xf32, #tpu.memory_space<vmem>>, vector<128x16xf32>
    %cst_38 = arith.constant dense<0.000000e+00> : vector<8x16xf32>
    %47 = tpu.matmul %45, %46, %cst_38 {dimension_numbers = #tpu.dot_dimension_numbers<[1], [0], [0], [1], [0, 0, 1, 1], [], []>} : vector<8x128xf32>, vector<128x16xf32>, vector<8x16xf32> -> vector<8x16xf32>
    %cst_39 = arith.constant 0.353553385 : f32
    %48 = vector.broadcast %cst_39 : f32 to vector<8x16xf32>
    %49 = arith.mulf %47, %48 : vector<8x16xf32>
    %50 = arith.maximumf %28, %35 : vector<8x16xf32>
    %51 = arith.maximumf %50, %42 : vector<8x16xf32>
    %52 = arith.maximumf %51, %49 : vector<8x16xf32>
    %53 = arith.subf %28, %52 : vector<8x16xf32>
    %54 = math.exp %53 : vector<8x16xf32>
    %55 = arith.subf %35, %52 : vector<8x16xf32>
    %56 = math.exp %55 : vector<8x16xf32>
    %57 = arith.subf %42, %52 : vector<8x16xf32>
    %58 = math.exp %57 : vector<8x16xf32>
    %59 = arith.subf %49, %52 : vector<8x16xf32>
    %60 = math.exp %59 : vector<8x16xf32>
    %61 = arith.addf %54, %56 : vector<8x16xf32>
    %62 = arith.addf %61, %58 : vector<8x16xf32>
    %63 = arith.addf %62, %60 : vector<8x16xf32>
    %64 = tpu.reciprocal %63 {approx = true} : vector<8x16xf32> -> vector<8x16xf32>
    %cst_40 = arith.constant 0.000000e+00 : f32
    %65 = vector.broadcast %cst_40 : f32 to vector<8x128xf32>
    %66 = arith.mulf %54, %64 : vector<8x16xf32>
    %c0_41 = arith.constant 0 : index
    %c0_42 = arith.constant 0 : index
    %67 = vector.load %arg13[%c0_41, %c0_42] : memref<16x128xf32, #tpu.memory_space<vmem>>, vector<16x128xf32>
    %cst_43 = arith.constant dense<0.000000e+00> : vector<8x128xf32>
    %68 = tpu.matmul %66, %67, %cst_43 {dimension_numbers = #tpu.dot_dimension_numbers<[1], [0], [0], [1], [0, 0, 1, 1], [], []>} : vector<8x16xf32>, vector<16x128xf32>, vector<8x128xf32> -> vector<8x128xf32>
    %69 = arith.mulf %68, %23 : vector<8x128xf32>
    %70 = arith.addf %65, %69 : vector<8x128xf32>
    %71 = arith.mulf %56, %64 : vector<8x16xf32>
    %c0_44 = arith.constant 0 : index
    %c0_45 = arith.constant 0 : index
    %72 = vector.load %arg13[%c0_44, %c0_45] : memref<16x128xf32, #tpu.memory_space<vmem>>, vector<16x128xf32>
    %cst_46 = arith.constant dense<0.000000e+00> : vector<8x128xf32>
    %73 = tpu.matmul %71, %72, %cst_46 {dimension_numbers = #tpu.dot_dimension_numbers<[1], [0], [0], [1], [0, 0, 1, 1], [], []>} : vector<8x16xf32>, vector<16x128xf32>, vector<8x128xf32> -> vector<8x128xf32>
    %74 = arith.mulf %73, %30 : vector<8x128xf32>
    %75 = arith.addf %70, %74 : vector<8x128xf32>
    %76 = arith.mulf %58, %64 : vector<8x16xf32>
    %c0_47 = arith.constant 0 : index
    %c0_48 = arith.constant 0 : index
    %77 = vector.load %arg13[%c0_47, %c0_48] : memref<16x128xf32, #tpu.memory_space<vmem>>, vector<16x128xf32>
    %cst_49 = arith.constant dense<0.000000e+00> : vector<8x128xf32>
    %78 = tpu.matmul %76, %77, %cst_49 {dimension_numbers = #tpu.dot_dimension_numbers<[1], [0], [0], [1], [0, 0, 1, 1], [], []>} : vector<8x16xf32>, vector<16x128xf32>, vector<8x128xf32> -> vector<8x128xf32>
    %79 = arith.mulf %78, %37 : vector<8x128xf32>
    %80 = arith.addf %75, %79 : vector<8x128xf32>
    %81 = arith.mulf %60, %64 : vector<8x16xf32>
    %c0_50 = arith.constant 0 : index
    %c0_51 = arith.constant 0 : index
    %82 = vector.load %arg13[%c0_50, %c0_51] : memref<16x128xf32, #tpu.memory_space<vmem>>, vector<16x128xf32>
    %cst_52 = arith.constant dense<0.000000e+00> : vector<8x128xf32>
    %83 = tpu.matmul %81, %82, %cst_52 {dimension_numbers = #tpu.dot_dimension_numbers<[1], [0], [0], [1], [0, 0, 1, 1], [], []>} : vector<8x16xf32>, vector<16x128xf32>, vector<8x128xf32> -> vector<8x128xf32>
    %84 = arith.mulf %83, %44 : vector<8x128xf32>
    %85 = arith.addf %80, %84 : vector<8x128xf32>
    %86 = arith.truncf %85 : vector<8x128xf32> to vector<8x128xbf16>
    %c0_53 = arith.constant 0 : index
    %c0_54 = arith.constant 0 : index
    %87 = vector.load %arg10[%c0_53, %c0_54] : memref<128x128xbf16, #tpu.memory_space<vmem>>, vector<128x128xbf16>
    %cst_55 = arith.constant dense<0.000000e+00> : vector<8x128xf32>
    %88 = tpu.matmul %86, %87, %cst_55 {dimension_numbers = #tpu.dot_dimension_numbers<[1], [0], [0], [1], [0, 0, 1, 1], [], []>} : vector<8x128xbf16>, vector<128x128xbf16>, vector<8x128xf32> -> vector<8x128xf32>
    %c0_56 = arith.constant 0 : index
    %c0_57 = arith.constant 0 : index
    %89 = vector.load %arg11[%c0_56, %c0_57] : memref<1x128xf32, #tpu.memory_space<vmem>>, vector<1x128xf32>
    %90 = vector.broadcast %89 : vector<1x128xf32> to vector<8x128xf32>
    %91 = arith.addf %88, %90 : vector<8x128xf32>
    %92 = arith.addf %7, %91 : vector<8x128xf32>
    %93 = arith.truncf %92 : vector<8x128xf32> to vector<8x128xbf16>
    %c0_58 = arith.constant 0 : index
    %c0_59 = arith.constant 0 : index
    %94 = vector.load %arg14[%c0_58, %c0_59] : memref<128x32xbf16, #tpu.memory_space<vmem>>, vector<128x32xbf16>
    %cst_60 = arith.constant dense<0.000000e+00> : vector<8x32xf32>
    %95 = tpu.matmul %93, %94, %cst_60 {dimension_numbers = #tpu.dot_dimension_numbers<[1], [0], [0], [1], [0, 0, 1, 1], [], []>} : vector<8x128xbf16>, vector<128x32xbf16>, vector<8x32xf32> -> vector<8x32xf32>
    %c0_61 = arith.constant 0 : index
    %c0_62 = arith.constant 0 : index
    %96 = vector.load %arg15[%c0_61, %c0_62] : memref<1x32xf32, #tpu.memory_space<vmem>>, vector<1x32xf32>
    %97 = vector.broadcast %96 : vector<1x32xf32> to vector<8x32xf32>
    %98 = arith.addf %95, %97 : vector<8x32xf32>
    %cst_63 = arith.constant 0.000000e+00 : f32
    %99 = vector.broadcast %cst_63 : f32 to vector<8x32xf32>
    %100 = arith.maximumf %98, %99 : vector<8x32xf32>
    %101 = arith.truncf %100 : vector<8x32xf32> to vector<8x32xbf16>
    %c0_64 = arith.constant 0 : index
    %c0_65 = arith.constant 0 : index
    %102 = vector.load %arg16[%c0_64, %c0_65] : memref<32x128xbf16, #tpu.memory_space<vmem>>, vector<32x128xbf16>
    %cst_66 = arith.constant dense<0.000000e+00> : vector<8x128xf32>
    %103 = tpu.matmul %101, %102, %cst_66 {dimension_numbers = #tpu.dot_dimension_numbers<[1], [0], [0], [1], [0, 0, 1, 1], [], []>} : vector<8x32xbf16>, vector<32x128xbf16>, vector<8x128xf32> -> vector<8x128xf32>
    %c0_67 = arith.constant 0 : index
    %c0_68 = arith.constant 0 : index
    %104 = vector.load %arg17[%c0_67, %c0_68] : memref<1x128xf32, #tpu.memory_space<vmem>>, vector<1x128xf32>
    %105 = vector.broadcast %104 : vector<1x128xf32> to vector<8x128xf32>
    %106 = arith.addf %103, %105 : vector<8x128xf32>
    %c0_69 = arith.constant 0 : index
    %c0_70 = arith.constant 0 : index
    %107 = vector.load %arg18[%c0_69, %c0_70] : memref<8x128xf32, #tpu.memory_space<vmem>>, vector<8x128xf32>
    tpu.vector_store %arg18[%c0_69, %c0_70], %106 {strides = array<i32>} : memref<8x128xf32, #tpu.memory_space<vmem>>, vector<8x128xf32>,
    return
  }
  func.func @transform_0(%arg0: i32) -> (i32, i32) {
    %c0_i32 = arith.constant 0 : i32
    %c0_i32_0 = arith.constant 0 : i32
    return %arg0, %c0_i32 : i32, i32
  }
  func.func @transform_1(%arg0: i32) -> (i32, i32) {
    %c0_i32 = arith.constant 0 : i32
    %c0_i32_0 = arith.constant 0 : i32
    %c0_i32_1 = arith.constant 0 : i32
    return %c0_i32, %c0_i32_0 : i32, i32
  }
  func.func @transform_2(%arg0: i32) -> (i32, i32) {
    %c0_i32 = arith.constant 0 : i32
    %c0_i32_0 = arith.constant 0 : i32
    %c0_i32_1 = arith.constant 0 : i32
    return %c0_i32, %c0_i32_0 : i32, i32
  }
  func.func @transform_3(%arg0: i32) -> (i32, i32) {
    %c0_i32 = arith.constant 0 : i32
    %c0_i32_0 = arith.constant 0 : i32
    %c0_i32_1 = arith.constant 0 : i32
    return %c0_i32, %c0_i32_0 : i32, i32
  }
  func.func @transform_4(%arg0: i32) -> (i32, i32) {
    %c0_i32 = arith.constant 0 : i32
    %c0_i32_0 = arith.constant 0 : i32
    %c0_i32_1 = arith.constant 0 : i32
    return %c0_i32, %c0_i32_0 : i32, i32
  }
  func.func @transform_5(%arg0: i32) -> (i32, i32) {
    %c0_i32 = arith.constant 0 : i32
    %c0_i32_0 = arith.constant 0 : i32
    %c0_i32_1 = arith.constant 0 : i32
    return %c0_i32, %c0_i32_0 : i32, i32
  }
  func.func @transform_6(%arg0: i32) -> (i32, i32) {
    %c0_i32 = arith.constant 0 : i32
    %c0_i32_0 = arith.constant 0 : i32
    %c0_i32_1 = arith.constant 0 : i32
    return %c0_i32, %c0_i32_0 : i32, i32
  }
  func.func @transform_7(%arg0: i32) -> (i32, i32) {
    %c0_i32 = arith.constant 0 : i32
    %c0_i32_0 = arith.constant 0 : i32
    %c0_i32_1 = arith.constant 0 : i32
    return %c0_i32, %c0_i32_0 : i32, i32
  }
  func.func @transform_8(%arg0: i32) -> (i32, i32) {
    %c0_i32 = arith.constant 0 : i32
    %c0_i32_0 = arith.constant 0 : i32
    %c0_i32_1 = arith.constant 0 : i32
    return %c0_i32, %c0_i32_0 : i32, i32
  }
  func.func @transform_9(%arg0: i32) -> (i32, i32) {
    %c0_i32 = arith.constant 0 : i32
    %c0_i32_0 = arith.constant 0 : i32
    %c0_i32_1 = arith.constant 0 : i32
    return %c0_i32, %c0_i32_0 : i32, i32
  }
  func.func @transform_10(%arg0: i32) -> (i32, i32) {
    %c0_i32 = arith.constant 0 : i32
    %c0_i32_0 = arith.constant 0 : i32
    %c0_i32_1 = arith.constant 0 : i32
    return %c0_i32, %c0_i32_0 : i32, i32
  }
  func.func @transform_11(%arg0: i32) -> (i32, i32) {
    %c0_i32 = arith.constant 0 : i32
    %c0_i32_0 = arith.constant 0 : i32
    %c0_i32_1 = arith.constant 0 : i32
    return %c0_i32, %c0_i32_0 : i32, i32
  }
  func.func @transform_12(%arg0: i32) -> (i32, i32) {
    %c0_i32 = arith.constant 0 : i32
    %c0_i32_0 = arith.constant 0 : i32
    %c0_i32_1 = arith.constant 0 : i32
    return %c0_i32, %c0_i32_0 : i32, i32
  }
  func.func @transform_13(%arg0: i32) -> (i32, i32) {
    %c0_i32 = arith.constant 0 : i32
    %c0_i32_0 = arith.constant 0 : i32
    %c0_i32_1 = arith.constant 0 : i32
    return %c0_i32, %c0_i32_0 : i32, i32
  }
  func.func @transform_14(%arg0: i32) -> (i32, i32) {
    %c0_i32 = arith.constant 0 : i32
    %c0_i32_0 = arith.constant 0 : i32
    %c0_i32_1 = arith.constant 0 : i32
    return %c0_i32, %c0_i32_0 : i32, i32
  }
  func.func @transform_15(%arg0: i32) -> (i32, i32) {
    %c0_i32 = arith.constant 0 : i32
    %c0_i32_0 = arith.constant 0 : i32
    %c0_i32_1 = arith.constant 0 : i32
    return %c0_i32, %c0_i32_0 : i32, i32
  }
  func.func @transform_16(%arg0: i32) -> (i32, i32) {
    %c0_i32 = arith.constant 0 : i32
    %c0_i32_0 = arith.constant 0 : i32
    %c0_i32_1 = arith.constant 0 : i32
    return %c0_i32, %c0_i32_0 : i32, i32
  }
  func.func @transform_17(%arg0: i32) -> (i32, i32) {
    %c0_i32 = arith.constant 0 : i32
    %c0_i32_0 = arith.constant 0 : i32
    return %arg0, %c0_i32 : i32, i32
  }
}

</mosaic_0001>

<llo_original>
// kernel: tpu_custom_call.1
$region0: #{tpu_custom_call.1}
  #allocation0 [shape = 'u32[]', space=smem, size = 0x4, offset = 0x4, fixed_abs, tag = 'smem constant byte address 0x4 - core index']
  #allocation1 [shape = 'u32[144,128]{1,0:T(1,128)}', space=vmem, size = 0x12000, scoped, tag = 'internal scratch']
  %s0 = inlined_call_operand.hbm [shape: bf16[8,64], index: 0, kind: input, shape index: {}]
  %s1 = inlined_call_operand.hbm [shape: bf16[64,128], index: 1, kind: input, shape index: {}]
  %s2 = inlined_call_operand.vmem [shape: f32[1,128], index: 2, kind: input, shape index: {}]
  %s3 = inlined_call_operand.vmem [shape: bf16[128,128], index: 3, kind: input, shape index: {}]
  %s4 = inlined_call_operand.hbm [shape: f32[1,128], index: 4, kind: input, shape index: {}]
  %s5 = inlined_call_operand.vmem [shape: bf16[128,128], index: 5, kind: input, shape index: {}]
  %s6 = inlined_call_operand.hbm [shape: f32[1,128], index: 6, kind: input, shape index: {}]
  %s7 = inlined_call_operand.vmem [shape: bf16[128,128], index: 7, kind: input, shape index: {}]
  %s8 = inlined_call_operand.hbm [shape: f32[1,128], index: 8, kind: input, shape index: {}]
  %s9 = inlined_call_operand.vmem [shape: bf16[128,128], index: 9, kind: input, shape index: {}]
  %s10 = inlined_call_operand.hbm [shape: f32[1,128], index: 10, kind: input, shape index: {}]
  %s11 = inlined_call_operand.vmem [shape: f32[128,16], index: 11, kind: input, shape index: {}]
  %s12 = inlined_call_operand.hbm [shape: f32[16,128], index: 12, kind: input, shape index: {}]
  %s13 = inlined_call_operand.vmem [shape: bf16[128,32], index: 13, kind: input, shape index: {}]
  %s14 = inlined_call_operand.vmem [shape: f32[1,32], index: 14, kind: input, shape index: {}]
  %s15 = inlined_call_operand.hbm [shape: bf16[32,128], index: 15, kind: input, shape index: {}]
  %s16 = inlined_call_operand.vmem [shape: f32[1,128], index: 16, kind: input, shape index: {}]
  %s17 = inlined_call_operand.hbm [shape: f32[8,128], index: 17, kind: output, shape index: {}]
  %s18 = sld [smem:[#allocation0]]
  $region110: #{tpu_custom_call.1} parent=0
    _
  %s20 = ssub.s32 1, %s18
  %s21 = scalar_select 0, %s20, %s18
  $region1: #{tpu_custom_call.1} parent=0
    #allocation2 [shape = 'u8[2048]{0}', space=vmem, size = 0x800, scoped, tag = 'input window, operand 0, single buffered']
    #allocation3 [shape = 's32[1]{0}', space=sflag, size = 0x4, scoped, tag = 'scoped memory for tpu_custom_call.1']
    #allocation4 [shape = 's32[1]{0}', space=sflag, size = 0x4, scoped, tag = 'scoped memory for tpu_custom_call.1']
    #allocation5 [shape = 'u8[16384]{0}', space=vmem, size = 0x4000, scoped, tag = 'input window, operand 1, single buffered']
    #allocation6 [shape = 's32[1]{0}', space=sflag, size = 0x4, scoped, tag = 'scoped memory for tpu_custom_call.1']
    #allocation7 [shape = 'u8[512]{0}', space=vmem, size = 0x400, scoped, tag = 'input window, operand 4, single buffered']
    #allocation8 [shape = 'u8[512]{0}', space=vmem, size = 0x400, scoped, tag = 'input window, operand 6, single buffered']
    #allocation9 [shape = 's32[1]{0}', space=sflag, size = 0x4, scoped, tag = 'scoped memory for tpu_custom_call.1']
    #allocation10 [shape = 'u8[512]{0}', space=vmem, size = 0x400, scoped, tag = 'input window, operand 8, single buffered']
    #allocation11 [shape = 'u8[512]{0}', space=vmem, size = 0x400, scoped, tag = 'input window, operand 10, single buffered']
    #allocation12 [shape = 's32[1]{0}', space=sflag, size = 0x4, scoped, tag = 'scoped memory for tpu_custom_call.1']
    #allocation13 [shape = 'u8[8192]{0}', space=vmem, size = 0x2000, scoped, tag = 'input window, operand 12, single buffered']
    #allocation14 [shape = 'u8[8192]{0}', space=vmem, size = 0x2000, scoped, tag = 'input window, operand 15, single buffered']
    #allocation15 [shape = 's32[1]{0}', space=sflag, size = 0x4, scoped, tag = 'scoped memory for tpu_custom_call.1']
    #allocation16 [shape = 'u8[4096]{0}', space=vmem, size = 0x1000, scoped, tag = 'output window, operand 0, single buffered']
    %22 = vsyncpa [#allocation3], 0
    %23 = vsyncpa [#allocation6], 0
    %24 = vsyncpa [#allocation9], 0
    %25 = vsyncpa [#allocation12], 0
    %26 = vsyncpa [#allocation15], 0
    %27 = vsyncpa [#allocation4], 0
    // Predicated region
    $region2: #{tpu_custom_call.1} parent=1 // pred_check
      _
    $region3: #{tpu_custom_call.1} parent=1 // pred_check_branch
      %29 = sbr.rel (0) target = $region5
    $region4: #{tpu_custom_call.1} parent=1 // pred_region
      %s31 = ssub.s32 64, 64
      %32 = vsyncadd [#allocation3], %s31
      %s34 = sshll.u32 [#allocation2], 4
      %s35 = int_to_ptr.vmem [resolvable:$true] %s34
      %37 = dma.hbm_to_vmem [thread:$0]  %s0, 64, %s35, [#allocation3]
    $region5: #{tpu_custom_call.1} parent=1 // pred_fallthru
      _
    // Predicated region
    $region6: #{tpu_custom_call.1} parent=1 // pred_check
      _
    $region7: #{tpu_custom_call.1} parent=1 // pred_check_branch
      %39 = sbr.rel (0) target = $region9
    $region8: #{tpu_custom_call.1} parent=1 // pred_region
      %s41 = ssub.s32 512, 512
      %42 = vsyncadd [#allocation6], %s41
      %s43 = sshll.u32 [#allocation5], 4
      %s44 = int_to_ptr.vmem [resolvable:$true] %s43
      %49 = dma.hbm_to_vmem [thread:$0]  %s1, 512, %s44, [#allocation6], 64, 64, 4
    $region9: #{tpu_custom_call.1} parent=1 // pred_fallthru
      _
    // Predicated region
    $region10: #{tpu_custom_call.1} parent=1 // pred_check
      _
    $region11: #{tpu_custom_call.1} parent=1 // pred_check_branch
      %51 = sbr.rel (0) target = $region13
    $region12: #{tpu_custom_call.1} parent=1 // pred_region
      _
    $region13: #{tpu_custom_call.1} parent=1 // pred_fallthru
      _
    // Predicated region
    $region14: #{tpu_custom_call.1} parent=1 // pred_check
      _
    $region15: #{tpu_custom_call.1} parent=1 // pred_check_branch
      %53 = sbr.rel (0) target = $region17
    $region16: #{tpu_custom_call.1} parent=1 // pred_region
      _
    $region17: #{tpu_custom_call.1} parent=1 // pred_fallthru
      _
    // Predicated region
    $region18: #{tpu_custom_call.1} parent=1 // pred_check
      _
    $region19: #{tpu_custom_call.1} parent=1 // pred_check_branch
      %55 = sbr.rel (0) target = $region21
    $region20: #{tpu_custom_call.1} parent=1 // pred_region
      %s57 = ssub.s32 16, 16
      %58 = vsyncadd [#allocation6], %s57
      %s60 = sshll.u32 [#allocation7], 4
      %s61 = int_to_ptr.vmem [resolvable:$true] %s60
      %63 = dma.hbm_to_vmem [thread:$0]  %s4, 16, %s61, [#allocation6]
    $region21: #{tpu_custom_call.1} parent=1 // pred_fallthru
      _
    // Predicated region
    $region22: #{tpu_custom_call.1} parent=1 // pred_check
      _
    $region23: #{tpu_custom_call.1} parent=1 // pred_check_branch
      %65 = sbr.rel (0) target = $region25
    $region24: #{tpu_custom_call.1} parent=1 // pred_region
      _
    $region25: #{tpu_custom_call.1} parent=1 // pred_fallthru
      _
    // Predicated region
    $region26: #{tpu_custom_call.1} parent=1 // pred_check
      _
    $region27: #{tpu_custom_call.1} parent=1 // pred_check_branch
      %67 = sbr.rel (0) target = $region29
    $region28: #{tpu_custom_call.1} parent=1 // pred_region
      %s69 = ssub.s32 16, 16
      %70 = vsyncadd [#allocation9], %s69
      %s72 = sshll.u32 [#allocation8], 4
      %s73 = int_to_ptr.vmem [resolvable:$true] %s72
      %75 = dma.hbm_to_vmem [thread:$0]  %s6, 16, %s73, [#allocation9]
    $region29: #{tpu_custom_call.1} parent=1 // pred_fallthru
      _
    // Predicated region
    $region30: #{tpu_custom_call.1} parent=1 // pred_check
      _
    $region31: #{tpu_custom_call.1} parent=1 // pred_check_branch
      %77 = sbr.rel (0) target = $region33
    $region32: #{tpu_custom_call.1} parent=1 // pred_region
      _
    $region33: #{tpu_custom_call.1} parent=1 // pred_fallthru
      _
    // Predicated region
    $region34: #{tpu_custom_call.1} parent=1 // pred_check
      _
    $region35: #{tpu_custom_call.1} parent=1 // pred_check_branch
      %79 = sbr.rel (0) target = $region37
    $region36: #{tpu_custom_call.1} parent=1 // pred_region
      %s81 = ssub.s32 16, 16
      %82 = vsyncadd [#allocation9], %s81
      %s84 = sshll.u32 [#allocation10], 4
      %s85 = int_to_ptr.vmem [resolvable:$true] %s84
      %87 = dma.hbm_to_vmem [thread:$0]  %s8, 16, %s85, [#allocation9]
    $region37: #{tpu_custom_call.1} parent=1 // pred_fallthru
      _
    // Predicated region
    $region38: #{tpu_custom_call.1} parent=1 // pred_check
      _
    $region39: #{tpu_custom_call.1} parent=1 // pred_check_branch
      %89 = sbr.rel (0) target = $region41
    $region40: #{tpu_custom_call.1} parent=1 // pred_region
      _
    $region41: #{tpu_custom_call.1} parent=1 // pred_fallthru
      _
    // Predicated region
    $region42: #{tpu_custom_call.1} parent=1 // pred_check
      _
    $region43: #{tpu_custom_call.1} parent=1 // pred_check_branch
      %91 = sbr.rel (0) target = $region45
    $region44: #{tpu_custom_call.1} parent=1 // pred_region
      %s93 = ssub.s32 16, 16
      %94 = vsyncadd [#allocation12], %s93
      %s96 = sshll.u32 [#allocation11], 4
      %s97 = int_to_ptr.vmem [resolvable:$true] %s96
      %99 = dma.hbm_to_vmem [thread:$0]  %s10, 16, %s97, [#allocation12]
    $region45: #{tpu_custom_call.1} parent=1 // pred_fallthru
      _
    // Predicated region
    $region46: #{tpu_custom_call.1} parent=1 // pred_check
      _
    $region47: #{tpu_custom_call.1} parent=1 // pred_check_branch
      %101 = sbr.rel (0) target = $region49
    $region48: #{tpu_custom_call.1} parent=1 // pred_region
      _
    $region49: #{tpu_custom_call.1} parent=1 // pred_fallthru
      _
    // Predicated region
    $region50: #{tpu_custom_call.1} parent=1 // pred_check
      _
    $region51: #{tpu_custom_call.1} parent=1 // pred_check_branch
      %103 = sbr.rel (0) target = $region53
    $region52: #{tpu_custom_call.1} parent=1 // pred_region
      %s105 = ssub.s32 256, 256
      %106 = vsyncadd [#allocation12], %s105
      %s107 = sshll.u32 [#allocation13], 4
      %s108 = int_to_ptr.vmem [resolvable:$true] %s107
      %113 = dma.hbm_to_vmem [thread:$0]  %s12, 256, %s108, [#allocation12], 128, 128, 8
    $region53: #{tpu_custom_call.1} parent=1 // pred_fallthru
      _
    // Predicated region
    $region54: #{tpu_custom_call.1} parent=1 // pred_check
      _
    $region55: #{tpu_custom_call.1} parent=1 // pred_check_branch
      %115 = sbr.rel (0) target = $region57
    $region56: #{tpu_custom_call.1} parent=1 // pred_region
      _
    $region57: #{tpu_custom_call.1} parent=1 // pred_fallthru
      _
    // Predicated region
    $region58: #{tpu_custom_call.1} parent=1 // pred_check
      _
    $region59: #{tpu_custom_call.1} parent=1 // pred_check_branch
      %117 = sbr.rel (0) target = $region61
    $region60: #{tpu_custom_call.1} parent=1 // pred_region
      _
    $region61: #{tpu_custom_call.1} parent=1 // pred_fallthru
      _
    // Predicated region
    $region62: #{tpu_custom_call.1} parent=1 // pred_check
      _
    $region63: #{tpu_custom_call.1} parent=1 // pred_check_branch
      %119 = sbr.rel (0) target = $region65
    $region64: #{tpu_custom_call.1} parent=1 // pred_region
      %s121 = ssub.s32 256, 256
      %122 = vsyncadd [#allocation15], %s121
      %s123 = sshll.u32 [#allocation14], 4
      %s124 = int_to_ptr.vmem [resolvable:$true] %s123
      %129 = dma.hbm_to_vmem [thread:$0]  %s15, 256, %s124, [#allocation15], 64, 64, 4
    $region65: #{tpu_custom_call.1} parent=1 // pred_fallthru
      _
    // Predicated region
    $region66: #{tpu_custom_call.1} parent=1 // pred_check
      _
    $region67: #{tpu_custom_call.1} parent=1 // pred_check_branch
      %131 = sbr.rel (0) target = $region69
    $region68: #{tpu_custom_call.1} parent=1 // pred_region
      _
    $region69: #{tpu_custom_call.1} parent=1 // pred_fallthru
      _
    // Predicated region
    $region70: #{tpu_custom_call.1} parent=1 // pred_check
      _
    $region71: #{tpu_custom_call.1} parent=1 // pred_check_branch
      %133 = sbr.rel (0) target = $region73
    $region72: #{tpu_custom_call.1} parent=1 // pred_region
      %134 = dma.done [#allocation3], 64
    $region73: #{tpu_custom_call.1} parent=1 // pred_fallthru
      _
    // Predicated region
    $region74: #{tpu_custom_call.1} parent=1 // pred_check
      _
    $region75: #{tpu_custom_call.1} parent=1 // pred_check_branch
      %136 = sbr.rel (0) target = $region77
    $region76: #{tpu_custom_call.1} parent=1 // pred_region
      %137 = dma.done [#allocation6], 512
    $region77: #{tpu_custom_call.1} parent=1 // pred_fallthru
      _
    // Predicated region
    $region78: #{tpu_custom_call.1} parent=1 // pred_check
      _
    $region79: #{tpu_custom_call.1} parent=1 // pred_check_branch
      %139 = sbr.rel (0) target = $region81
    $region80: #{tpu_custom_call.1} parent=1 // pred_region
      %140 = dma.done [#allocation6], 16
    $region81: #{tpu_custom_call.1} parent=1 // pred_fallthru
      _
    // Predicated region
    $region82: #{tpu_custom_call.1} parent=1 // pred_check
      _
    $region83: #{tpu_custom_call.1} parent=1 // pred_check_branch
      %142 = sbr.rel (0) target = $region85
    $region84: #{tpu_custom_call.1} parent=1 // pred_region
      %143 = dma.done [#allocation9], 16
    $region85: #{tpu_custom_call.1} parent=1 // pred_fallthru
      _
    // Predicated region
    $region86: #{tpu_custom_call.1} parent=1 // pred_check
      _
    $region87: #{tpu_custom_call.1} parent=1 // pred_check_branch
      %145 = sbr.rel (0) target = $region89
    $region88: #{tpu_custom_call.1} parent=1 // pred_region
      %146 = dma.done [#allocation9], 16
    $region89: #{tpu_custom_call.1} parent=1 // pred_fallthru
      _
    // Predicated region
    $region90: #{tpu_custom_call.1} parent=1 // pred_check
      _
    $region91: #{tpu_custom_call.1} parent=1 // pred_check_branch
      %148 = sbr.rel (0) target = $region93
    $region92: #{tpu_custom_call.1} parent=1 // pred_region
      %149 = dma.done [#allocation12], 16
    $region93: #{tpu_custom_call.1} parent=1 // pred_fallthru
      _
    // Predicated region
    $region94: #{tpu_custom_call.1} parent=1 // pred_check
      _
    $region95: #{tpu_custom_call.1} parent=1 // pred_check_branch
      %151 = sbr.rel (0) target = $region97
    $region96: #{tpu_custom_call.1} parent=1 // pred_region
      %152 = dma.done [#allocation12], 256
    $region97: #{tpu_custom_call.1} parent=1 // pred_fallthru
      _
    // Predicated region
    $region98: #{tpu_custom_call.1} parent=1 // pred_check
      _
    $region99: #{tpu_custom_call.1} parent=1 // pred_check_branch
      %154 = sbr.rel (0) target = $region101
    $region100: #{tpu_custom_call.1} parent=1 // pred_region
      %155 = dma.done [#allocation15], 256
    $region101: #{tpu_custom_call.1} parent=1 // pred_fallthru
      _
    %v157 = vld [vmem:[#allocation2] sm:$0xf]
    %v158 = vld [vmem:[#allocation5] sm:$0xf]
    %v159 = vld [vmem:[#allocation5 + $0x4] sm:$0xf]
    %v160 = vld [vmem:[#allocation5 + $0x8] sm:$0xf]
    %v161 = vld [vmem:[#allocation5 + $0xc] sm:$0xf]
    %v162 = vld [vmem:[#allocation5 + $0x10] sm:$0xf]
    %v163 = vld [vmem:[#allocation5 + $0x14] sm:$0xf]
    %v164 = vld [vmem:[#allocation5 + $0x18] sm:$0xf]
    %v165 = vld [vmem:[#allocation5 + $0x1c] sm:$0xf]
    %v166 = vld [vmem:[%s2] sm:$0x1]
    %v168 = vlaneseq
    %v169 = vshrl.u32 %v168, 7
    %v170 = vsub.s32 0, %v169
    %v171 = vrot.slane %v166, %v170
    %v181 = vunpack.c.l.b16 %v158
    %v182 = vunpack.c.l.b16 %v159
    %v183 = vunpack.c.l.b16 %v160
    %v184 = vunpack.c.l.b16 %v161
    %v185 = vunpack.c.l.b16 %v162
    %v186 = vunpack.c.l.b16 %v163
    %v187 = vunpack.c.l.b16 %v164
    %v188 = vunpack.c.l.b16 %v165
    %v189 = vpack.c.b16 %v182, %v181
    %v190 = vpack.c.b16 %v184, %v183
    %v191 = vpack.c.b16 %v186, %v185
    %v192 = vpack.c.b16 %v188, %v187
    %vm197 = vcmask 523264
    %v199 = vsel %vm197, %v157, 0
    %201 = vmatprep.subr.bf16.mxu0 0
    %202 = vmatpush1.bf16.msra.mxu0 %v189
    %203 = vmatprep.subr.bf16.mxu0 0
    %204 = vmatpush1.bf16.msra.mxu0 %v190
    %205 = vmatprep.subr.bf16.mxu0 0
    %206 = vmatpush1.bf16.msra.mxu0 %v191
    %207 = vmatprep.subr.bf16.mxu0 0
    %208 = vmatpush1.bf16.msra.mxu0 %v192
    %209 = vmatprep.subr.bf16.mxu0 0
    %210 = vmatpush1.bf16.msra.mxu0 0
    %211 = vmatprep.subr.bf16.mxu0 0
    %212 = vmatpush1.bf16.msra.mxu0 0
    %213 = vmatprep.subr.bf16.mxu0 0
    %214 = vmatpush1.bf16.msra.mxu0 0
    %215 = vmatprep.subr.bf16.mxu0 0
    %216 = vmatpush1.bf16.msra.mxu0 0
    %217 = vmatprep.subr.bf16.mxu0 0
    %218 = vmatpush1.bf16.msra.mxu0 0
    %219 = vmatprep.subr.bf16.mxu0 0
    %220 = vmatpush1.bf16.msra.mxu0 0
    %221 = vmatprep.subr.bf16.mxu0 0
    %222 = vmatpush1.bf16.msra.mxu0 0
    %223 = vmatprep.subr.bf16.mxu0 0
    %224 = vmatpush1.bf16.msra.mxu0 0
    %225 = vmatprep.subr.bf16.mxu0 0
    %226 = vmatpush1.bf16.msra.mxu0 0
    %227 = vmatprep.subr.bf16.mxu0 0
    %228 = vmatpush1.bf16.msra.mxu0 0
    %229 = vmatprep.subr.bf16.mxu0 0
    %230 = vmatpush1.bf16.msra.mxu0 0
    %231 = vmatprep.subr.bf16.mxu0 0
    %232 = vmatpush1.bf16.msra.mxu0 0
    %233 = vmatprep.mubr.bf16.mxu0 0
    %234 = vmatmul.mubr.bf16.gmra.mrb[0].mxu0 %v199
    %v235 = vpop.f32.mrb[0].mxu0
    %v236 = vadd.f32 %v171, %v235
    %v237 = vpop.f32.mrb[0].mxu0
    %v238 = vpop.f32.mrb[0].mxu0
    %v239 = vpop.f32.mrb[0].mxu0
    %240 = vdwg.mxu0
    %v241 = vmax.f32 %v236, 0.0
    %v242 = vpack.c.bf16 %v241, %v241
    %v243 = vld [vmem:[%s3] sm:$0xf]
    %v244 = vld [vmem:[%s3 + $0x4] sm:$0xf]
    %v245 = vld [vmem:[%s3 + $0x8] sm:$0xf]
    %v246 = vld [vmem:[%s3 + $0xc] sm:$0xf]
    %v247 = vld [vmem:[%s3 + $0x10] sm:$0xf]
    %v248 = vld [vmem:[%s3 + $0x14] sm:$0xf]
    %v249 = vld [vmem:[%s3 + $0x18] sm:$0xf]
    %v250 = vld [vmem:[%s3 + $0x1c] sm:$0xf]
    %v251 = vld [vmem:[%s3 + $0x20] sm:$0xf]
    %v252 = vld [vmem:[%s3 + $0x24] sm:$0xf]
    %v253 = vld [vmem:[%s3 + $0x28] sm:$0xf]
    %v254 = vld [vmem:[%s3 + $0x2c] sm:$0xf]
    %v255 = vld [vmem:[%s3 + $0x30] sm:$0xf]
    %v256 = vld [vmem:[%s3 + $0x34] sm:$0xf]
    %v257 = vld [vmem:[%s3 + $0x38] sm:$0xf]
    %v258 = vld [vmem:[%s3 + $0x3c] sm:$0xf]
    %v259 = vld [vmem:[#allocation7] sm:$0x1]
    %v261 = vlaneseq
    %v262 = vshrl.u32 %v261, 7
    %v263 = vsub.s32 0, %v262
    %v264 = vrot.slane %v259, %v263
    %v282 = vunpack.c.l.b16 %v243
    %v283 = vunpack.c.l.b16 %v244
    %v284 = vunpack.c.l.b16 %v245
    %v285 = vunpack.c.l.b16 %v246
    %v286 = vunpack.c.l.b16 %v247
    %v287 = vunpack.c.l.b16 %v248
    %v288 = vunpack.c.l.b16 %v249
    %v289 = vunpack.c.l.b16 %v250
    %v290 = vunpack.c.l.b16 %v251
    %v291 = vunpack.c.l.b16 %v252
    %v292 = vunpack.c.l.b16 %v253
    %v293 = vunpack.c.l.b16 %v254
    %v294 = vunpack.c.l.b16 %v255
    %v295 = vunpack.c.l.b16 %v256
    %v296 = vunpack.c.l.b16 %v257
    %v297 = vunpack.c.l.b16 %v258
    %v298 = vpack.c.b16 %v283, %v282
    %v299 = vpack.c.b16 %v285, %v284
    %v300 = vpack.c.b16 %v287, %v286
    %v301 = vpack.c.b16 %v289, %v288
    %v302 = vpack.c.b16 %v291, %v290
    %v303 = vpack.c.b16 %v293, %v292
    %v304 = vpack.c.b16 %v295, %v294
    %v305 = vpack.c.b16 %v297, %v296
    %314 = vmatprep.subr.bf16.mxu0 0
    %315 = vmatpush1.bf16.msra.mxu0 %v298
    %316 = vmatprep.subr.bf16.mxu0 0
    %317 = vmatpush1.bf16.msra.mxu0 %v299
    %318 = vmatprep.subr.bf16.mxu0 0
    %319 = vmatpush1.bf16.msra.mxu0 %v300
    %320 = vmatprep.subr.bf16.mxu0 0
    %321 = vmatpush1.bf16.msra.mxu0 %v301
    %322 = vmatprep.subr.bf16.mxu0 0
    %323 = vmatpush1.bf16.msra.mxu0 %v302
    %324 = vmatprep.subr.bf16.mxu0 0
    %325 = vmatpush1.bf16.msra.mxu0 %v303
    %326 = vmatprep.subr.bf16.mxu0 0
    %327 = vmatpush1.bf16.msra.mxu0 %v304
    %328 = vmatprep.subr.bf16.mxu0 0
    %329 = vmatpush1.bf16.msra.mxu0 %v305
    %330 = vmatprep.subr.bf16.mxu0 0
    %331 = vmatpush1.bf16.msra.mxu0 0
    %332 = vmatprep.subr.bf16.mxu0 0
    %333 = vmatpush1.bf16.msra.mxu0 0
    %334 = vmatprep.subr.bf16.mxu0 0
    %335 = vmatpush1.bf16.msra.mxu0 0
    %336 = vmatprep.subr.bf16.mxu0 0
    %337 = vmatpush1.bf16.msra.mxu0 0
    %338 = vmatprep.subr.bf16.mxu0 0
    %339 = vmatpush1.bf16.msra.mxu0 0
    %340 = vmatprep.subr.bf16.mxu0 0
    %341 = vmatpush1.bf16.msra.mxu0 0
    %342 = vmatprep.subr.bf16.mxu0 0
    %343 = vmatpush1.bf16.msra.mxu0 0
    %344 = vmatprep.subr.bf16.mxu0 0
    %345 = vmatpush1.bf16.msra.mxu0 0
    %346 = vmatprep.mubr.bf16.mxu0 0
    %347 = vmatmul.mubr.bf16.gmra.mrb[0].mxu0 %v242
    %v348 = vpop.f32.mrb[0].mxu0
    %v349 = vadd.f32 %v264, %v348
    %v350 = vpop.f32.mrb[0].mxu0
    %v351 = vpop.f32.mrb[0].mxu0
    %v352 = vpop.f32.mrb[0].mxu0
    %353 = vdwg.mxu0
    %v354 = vld [vmem:[%s5] sm:$0xf]
    %v355 = vld [vmem:[%s5 + $0x4] sm:$0xf]
    %v356 = vld [vmem:[%s5 + $0x8] sm:$0xf]
    %v357 = vld [vmem:[%s5 + $0xc] sm:$0xf]
    %v358 = vld [vmem:[%s5 + $0x10] sm:$0xf]
    %v359 = vld [vmem:[%s5 + $0x14] sm:$0xf]
    %v360 = vld [vmem:[%s5 + $0x18] sm:$0xf]
    %v361 = vld [vmem:[%s5 + $0x1c] sm:$0xf]
    %v362 = vld [vmem:[%s5 + $0x20] sm:$0xf]
    %v363 = vld [vmem:[%s5 + $0x24] sm:$0xf]
    %v364 = vld [vmem:[%s5 + $0x28] sm:$0xf]
    %v365 = vld [vmem:[%s5 + $0x2c] sm:$0xf]
    %v366 = vld [vmem:[%s5 + $0x30] sm:$0xf]
    %v367 = vld [vmem:[%s5 + $0x34] sm:$0xf]
    %v368 = vld [vmem:[%s5 + $0x38] sm:$0xf]
    %v369 = vld [vmem:[%s5 + $0x3c] sm:$0xf]
    %v370 = vld [vmem:[#allocation8] sm:$0x1]
    %v372 = vlaneseq
    %v373 = vshrl.u32 %v372, 7
    %v374 = vsub.s32 0, %v373
    %v375 = vrot.slane %v370, %v374
    %v393 = vunpack.c.l.b16 %v354
    %v394 = vunpack.c.l.b16 %v355
    %v395 = vunpack.c.l.b16 %v356
    %v396 = vunpack.c.l.b16 %v357
    %v397 = vunpack.c.l.b16 %v358
    %v398 = vunpack.c.l.b16 %v359
    %v399 = vunpack.c.l.b16 %v360
    %v400 = vunpack.c.l.b16 %v361
    %v401 = vunpack.c.l.b16 %v362
    %v402 = vunpack.c.l.b16 %v363
    %v403 = vunpack.c.l.b16 %v364
    %v404 = vunpack.c.l.b16 %v365
    %v405 = vunpack.c.l.b16 %v366
    %v406 = vunpack.c.l.b16 %v367
    %v407 = vunpack.c.l.b16 %v368
    %v408 = vunpack.c.l.b16 %v369
    %v409 = vpack.c.b16 %v394, %v393
    %v410 = vpack.c.b16 %v396, %v395
    %v411 = vpack.c.b16 %v398, %v397
    %v412 = vpack.c.b16 %v400, %v399
    %v413 = vpack.c.b16 %v402, %v401
    %v414 = vpack.c.b16 %v404, %v403
    %v415 = vpack.c.b16 %v406, %v405
    %v416 = vpack.c.b16 %v408, %v407
    %425 = vmatprep.subr.bf16.mxu0 0
    %426 = vmatpush1.bf16.msra.mxu0 %v409
    %427 = vmatprep.subr.bf16.mxu0 0
    %428 = vmatpush1.bf16.msra.mxu0 %v410
    %429 = vmatprep.subr.bf16.mxu0 0
    %430 = vmatpush1.bf16.msra.mxu0 %v411
    %431 = vmatprep.subr.bf16.mxu0 0
    %432 = vmatpush1.bf16.msra.mxu0 %v412
    %433 = vmatprep.subr.bf16.mxu0 0
    %434 = vmatpush1.bf16.msra.mxu0 %v413
    %435 = vmatprep.subr.bf16.mxu0 0
    %436 = vmatpush1.bf16.msra.mxu0 %v414
    %437 = vmatprep.subr.bf16.mxu0 0
    %438 = vmatpush1.bf16.msra.mxu0 %v415
    %439 = vmatprep.subr.bf16.mxu0 0
    %440 = vmatpush1.bf16.msra.mxu0 %v416
    %441 = vmatprep.subr.bf16.mxu0 0
    %442 = vmatpush1.bf16.msra.mxu0 0
    %443 = vmatprep.subr.bf16.mxu0 0
    %444 = vmatpush1.bf16.msra.mxu0 0
    %445 = vmatprep.subr.bf16.mxu0 0
    %446 = vmatpush1.bf16.msra.mxu0 0
    %447 = vmatprep.subr.bf16.mxu0 0
    %448 = vmatpush1.bf16.msra.mxu0 0
    %449 = vmatprep.subr.bf16.mxu0 0
    %450 = vmatpush1.bf16.msra.mxu0 0
    %451 = vmatprep.subr.bf16.mxu0 0
    %452 = vmatpush1.bf16.msra.mxu0 0
    %453 = vmatprep.subr.bf16.mxu0 0
    %454 = vmatpush1.bf16.msra.mxu0 0
    %455 = vmatprep.subr.bf16.mxu0 0
    %456 = vmatpush1.bf16.msra.mxu0 0
    %457 = vmatprep.mubr.bf16.mxu0 0
    %458 = vmatmul.mubr.bf16.gmra.mrb[0].mxu0 %v242
    %v459 = vpop.f32.mrb[0].mxu0
    %v460 = vadd.f32 %v375, %v459
    %v461 = vpop.f32.mrb[0].mxu0
    %v462 = vpop.f32.mrb[0].mxu0
    %v463 = vpop.f32.mrb[0].mxu0
    %464 = vdwg.mxu0
    %v465 = vld [vmem:[%s7] sm:$0xf]
    %v466 = vld [vmem:[%s7 + $0x4] sm:$0xf]
    %v467 = vld [vmem:[%s7 + $0x8] sm:$0xf]
    %v468 = vld [vmem:[%s7 + $0xc] sm:$0xf]
    %v469 = vld [vmem:[%s7 + $0x10] sm:$0xf]
    %v470 = vld [vmem:[%s7 + $0x14] sm:$0xf]
    %v471 = vld [vmem:[%s7 + $0x18] sm:$0xf]
    %v472 = vld [vmem:[%s7 + $0x1c] sm:$0xf]
    %v473 = vld [vmem:[%s7 + $0x20] sm:$0xf]
    %v474 = vld [vmem:[%s7 + $0x24] sm:$0xf]
    %v475 = vld [vmem:[%s7 + $0x28] sm:$0xf]
    %v476 = vld [vmem:[%s7 + $0x2c] sm:$0xf]
    %v477 = vld [vmem:[%s7 + $0x30] sm:$0xf]
    %v478 = vld [vmem:[%s7 + $0x34] sm:$0xf]
    %v479 = vld [vmem:[%s7 + $0x38] sm:$0xf]
    %v480 = vld [vmem:[%s7 + $0x3c] sm:$0xf]
    %v481 = vld [vmem:[#allocation10] sm:$0x1]
    %v483 = vlaneseq
    %v484 = vshrl.u32 %v483, 7
    %v485 = vsub.s32 0, %v484
    %v486 = vrot.slane %v481, %v485
    %v504 = vunpack.c.l.b16 %v465
    %v505 = vunpack.c.l.b16 %v466
    %v506 = vunpack.c.l.b16 %v467
    %v507 = vunpack.c.l.b16 %v468
    %v508 = vunpack.c.l.b16 %v469
    %v509 = vunpack.c.l.b16 %v470
    %v510 = vunpack.c.l.b16 %v471
    %v511 = vunpack.c.l.b16 %v472
    %v512 = vunpack.c.l.b16 %v473
    %v513 = vunpack.c.l.b16 %v474
    %v514 = vunpack.c.l.b16 %v475
    %v515 = vunpack.c.l.b16 %v476
    %v516 = vunpack.c.l.b16 %v477
    %v517 = vunpack.c.l.b16 %v478
    %v518 = vunpack.c.l.b16 %v479
    %v519 = vunpack.c.l.b16 %v480
    %v520 = vpack.c.b16 %v505, %v504
    %v521 = vpack.c.b16 %v507, %v506
    %v522 = vpack.c.b16 %v509, %v508
    %v523 = vpack.c.b16 %v511, %v510
    %v524 = vpack.c.b16 %v513, %v512
    %v525 = vpack.c.b16 %v515, %v514
    %v526 = vpack.c.b16 %v517, %v516
    %v527 = vpack.c.b16 %v519, %v518
    %536 = vmatprep.subr.bf16.mxu0 0
    %537 = vmatpush1.bf16.msra.mxu0 %v520
    %538 = vmatprep.subr.bf16.mxu0 0
    %539 = vmatpush1.bf16.msra.mxu0 %v521
    %540 = vmatprep.subr.bf16.mxu0 0
    %541 = vmatpush1.bf16.msra.mxu0 %v522
    %542 = vmatprep.subr.bf16.mxu0 0
    %543 = vmatpush1.bf16.msra.mxu0 %v523
    %544 = vmatprep.subr.bf16.mxu0 0
    %545 = vmatpush1.bf16.msra.mxu0 %v524
    %546 = vmatprep.subr.bf16.mxu0 0
    %547 = vmatpush1.bf16.msra.mxu0 %v525
    %548 = vmatprep.subr.bf16.mxu0 0
    %549 = vmatpush1.bf16.msra.mxu0 %v526
    %550 = vmatprep.subr.bf16.mxu0 0
    %551 = vmatpush1.bf16.msra.mxu0 %v527
    %552 = vmatprep.subr.bf16.mxu0 0
    %553 = vmatpush1.bf16.msra.mxu0 0
    %554 = vmatprep.subr.bf16.mxu0 0
    %555 = vmatpush1.bf16.msra.mxu0 0
    %556 = vmatprep.subr.bf16.mxu0 0
    %557 = vmatpush1.bf16.msra.mxu0 0
    %558 = vmatprep.subr.bf16.mxu0 0
    %559 = vmatpush1.bf16.msra.mxu0 0
    %560 = vmatprep.subr.bf16.mxu0 0
    %561 = vmatpush1.bf16.msra.mxu0 0
    %562 = vmatprep.subr.bf16.mxu0 0
    %563 = vmatpush1.bf16.msra.mxu0 0
    %564 = vmatprep.subr.bf16.mxu0 0
    %565 = vmatpush1.bf16.msra.mxu0 0
    %566 = vmatprep.subr.bf16.mxu0 0
    %567 = vmatpush1.bf16.msra.mxu0 0
    %568 = vmatprep.mubr.bf16.mxu0 0
    %569 = vmatmul.mubr.bf16.gmra.mrb[0].mxu0 %v242
    %v570 = vpop.f32.mrb[0].mxu0
    %v571 = vadd.f32 %v486, %v570
    %v572 = vpop.f32.mrb[0].mxu0
    %v573 = vpop.f32.mrb[0].mxu0
    %v574 = vpop.f32.mrb[0].mxu0
    %575 = vdwg.mxu0
    %v576 = vmul.f32 %v349, %v460
    %v577 = vld [vmem:[%s11] sm:$0xff]
    %v578 = vld [vmem:[%s11 + $0x8] sm:$0xff]
    %v579 = vld [vmem:[%s11 + $0x10] sm:$0xff]
    %v580 = vld [vmem:[%s11 + $0x18] sm:$0xff]
    %v581 = vld [vmem:[%s11 + $0x20] sm:$0xff]
    %v582 = vld [vmem:[%s11 + $0x28] sm:$0xff]
    %v583 = vld [vmem:[%s11 + $0x30] sm:$0xff]
    %v584 = vld [vmem:[%s11 + $0x38] sm:$0xff]
    %v585 = vld [vmem:[%s11 + $0x40] sm:$0xff]
    %v586 = vld [vmem:[%s11 + $0x48] sm:$0xff]
    %v587 = vld [vmem:[%s11 + $0x50] sm:$0xff]
    %v588 = vld [vmem:[%s11 + $0x58] sm:$0xff]
    %v589 = vld [vmem:[%s11 + $0x60] sm:$0xff]
    %v590 = vld [vmem:[%s11 + $0x68] sm:$0xff]
    %v591 = vld [vmem:[%s11 + $0x70] sm:$0xff]
    %v592 = vld [vmem:[%s11 + $0x78] sm:$0xff]
    %593 = vmatprep.subr.mxu0 0.0
    %594 = vmatpush1.msra.mxu0 %v577
    %595 = vmatprep.subr.mxu0 0.0
    %596 = vmatpush1.msra.mxu0 %v578
    %597 = vmatprep.subr.mxu0 0.0
    %598 = vmatpush1.msra.mxu0 %v579
    %599 = vmatprep.subr.mxu0 0.0
    %600 = vmatpush1.msra.mxu0 %v580
    %601 = vmatprep.subr.mxu0 0.0
    %602 = vmatpush1.msra.mxu0 %v581
    %603 = vmatprep.subr.mxu0 0.0
    %604 = vmatpush1.msra.mxu0 %v582
    %605 = vmatprep.subr.mxu0 0.0
    %606 = vmatpush1.msra.mxu0 %v583
    %607 = vmatprep.subr.mxu0 0.0
    %608 = vmatpush1.msra.mxu0 %v584
    %609 = vmatprep.subr.mxu0 0.0
    %610 = vmatpush1.msra.mxu0 %v585
    %611 = vmatprep.subr.mxu0 0.0
    %612 = vmatpush1.msra.mxu0 %v586
    %613 = vmatprep.subr.mxu0 0.0
    %614 = vmatpush1.msra.mxu0 %v587
    %615 = vmatprep.subr.mxu0 0.0
    %616 = vmatpush1.msra.mxu0 %v588
    %617 = vmatprep.subr.mxu0 0.0
    %618 = vmatpush1.msra.mxu0 %v589
    %619 = vmatprep.subr.mxu0 0.0
    %620 = vmatpush1.msra.mxu0 %v590
    %621 = vmatprep.subr.mxu0 0.0
    %622 = vmatpush1.msra.mxu0 %v591
    %623 = vmatprep.subr.mxu0 0.0
    %624 = vmatpush1.msra.mxu0 %v592
    %625 = vmatprep.subr.mxu0 0.0
    %626 = vmatpush1.msra.mxu0 0.0
    %627 = vmatprep.subr.mxu0 0.0
    %628 = vmatpush1.msra.mxu0 0.0
    %629 = vmatprep.subr.mxu0 0.0
    %630 = vmatpush1.msra.mxu0 0.0
    %631 = vmatprep.subr.mxu0 0.0
    %632 = vmatpush1.msra.mxu0 0.0
    %633 = vmatprep.subr.mxu0 0.0
    %634 = vmatpush1.msra.mxu0 0.0
    %635 = vmatprep.subr.mxu0 0.0
    %636 = vmatpush1.msra.mxu0 0.0
    %637 = vmatprep.subr.mxu0 0.0
    %638 = vmatpush1.msra.mxu0 0.0
    %639 = vmatprep.subr.mxu0 0.0
    %640 = vmatpush1.msra.mxu0 0.0
    %641 = vmatprep.subr.mxu0 0.0
    %642 = vmatpush1.msra.mxu0 0.0
    %643 = vmatprep.subr.mxu0 0.0
    %644 = vmatpush1.msra.mxu0 0.0
    %645 = vmatprep.subr.mxu0 0.0
    %646 = vmatpush1.msra.mxu0 0.0
    %647 = vmatprep.subr.mxu0 0.0
    %648 = vmatpush1.msra.mxu0 0.0
    %649 = vmatprep.subr.mxu0 0.0
    %650 = vmatpush1.msra.mxu0 0.0
    %651 = vmatprep.subr.mxu0 0.0
    %652 = vmatpush1.msra.mxu0 0.0
    %653 = vmatprep.subr.mxu0 0.0
    %654 = vmatpush1.msra.mxu0 0.0
    %655 = vmatprep.subr.mxu0 0.0
    %656 = vmatpush1.msra.mxu0 0.0
    %657 = vmatprep.mubr.f32.mxu0 0.0
    %658 = vmatmul.mubr.f32.gmra.mrb[0].mxu0 %v576
    %v659 = vpop.f32.mrb[0].mxu0
    %v660 = vadd.f32 0.0, %v659
    %v661 = vpop.f32.mrb[0].mxu0
    %662 = vdwg.mxu0
    %v663 = vmul.f32 %v660, 0.35355338
    %664 = vrot.lane.b32.xlu0 %v460, 32
    %v665 = vpop.permute.xlu0 %664
    %666 = vrot.lane.b32.xlu0 %v571, 32
    %v667 = vpop.permute.xlu0 %666
    %v668 = vmul.f32 %v349, %v665
    %669 = vmatprep.subr.mxu0 0.0
    %670 = vmatpush1.msra.mxu0 %v577
    %671 = vmatprep.subr.mxu0 0.0
    %672 = vmatpush1.msra.mxu0 %v578
    %673 = vmatprep.subr.mxu0 0.0
    %674 = vmatpush1.msra.mxu0 %v579
    %675 = vmatprep.subr.mxu0 0.0
    %676 = vmatpush1.msra.mxu0 %v580
    %677 = vmatprep.subr.mxu0 0.0
    %678 = vmatpush1.msra.mxu0 %v581
    %679 = vmatprep.subr.mxu0 0.0
    %680 = vmatpush1.msra.mxu0 %v582
    %681 = vmatprep.subr.mxu0 0.0
    %682 = vmatpush1.msra.mxu0 %v583
    %683 = vmatprep.subr.mxu0 0.0
    %684 = vmatpush1.msra.mxu0 %v584
    %685 = vmatprep.subr.mxu0 0.0
    %686 = vmatpush1.msra.mxu0 %v585
    %687 = vmatprep.subr.mxu0 0.0
    %688 = vmatpush1.msra.mxu0 %v586
    %689 = vmatprep.subr.mxu0 0.0
    %690 = vmatpush1.msra.mxu0 %v587
    %691 = vmatprep.subr.mxu0 0.0
    %692 = vmatpush1.msra.mxu0 %v588
    %693 = vmatprep.subr.mxu0 0.0
    %694 = vmatpush1.msra.mxu0 %v589
    %695 = vmatprep.subr.mxu0 0.0
    %696 = vmatpush1.msra.mxu0 %v590
    %697 = vmatprep.subr.mxu0 0.0
    %698 = vmatpush1.msra.mxu0 %v591
    %699 = vmatprep.subr.mxu0 0.0
    %700 = vmatpush1.msra.mxu0 %v592
    %701 = vmatprep.subr.mxu0 0.0
    %702 = vmatpush1.msra.mxu0 0.0
    %703 = vmatprep.subr.mxu0 0.0
    %704 = vmatpush1.msra.mxu0 0.0
    %705 = vmatprep.subr.mxu0 0.0
    %706 = vmatpush1.msra.mxu0 0.0
    %707 = vmatprep.subr.mxu0 0.0
    %708 = vmatpush1.msra.mxu0 0.0
    %709 = vmatprep.subr.mxu0 0.0
    %710 = vmatpush1.msra.mxu0 0.0
    %711 = vmatprep.subr.mxu0 0.0
    %712 = vmatpush1.msra.mxu0 0.0
    %713 = vmatprep.subr.mxu0 0.0
    %714 = vmatpush1.msra.mxu0 0.0
    %715 = vmatprep.subr.mxu0 0.0
    %716 = vmatpush1.msra.mxu0 0.0
    %717 = vmatprep.subr.mxu0 0.0
    %718 = vmatpush1.msra.mxu0 0.0
    %719 = vmatprep.subr.mxu0 0.0
    %720 = vmatpush1.msra.mxu0 0.0
    %721 = vmatprep.subr.mxu0 0.0
    %722 = vmatpush1.msra.mxu0 0.0
    %723 = vmatprep.subr.mxu0 0.0
    %724 = vmatpush1.msra.mxu0 0.0
    %725 = vmatprep.subr.mxu0 0.0
    %726 = vmatpush1.msra.mxu0 0.0
    %727 = vmatprep.subr.mxu0 0.0
    %728 = vmatpush1.msra.mxu0 0.0
    %729 = vmatprep.subr.mxu0 0.0
    %730 = vmatpush1.msra.mxu0 0.0
    %731 = vmatprep.subr.mxu0 0.0
    %732 = vmatpush1.msra.mxu0 0.0
    %733 = vmatprep.mubr.f32.mxu0 0.0
    %734 = vmatmul.mubr.f32.gmra.mrb[0].mxu0 %v668
    %v735 = vpop.f32.mrb[0].mxu0
    %v736 = vadd.f32 0.0, %v735
    %v737 = vpop.f32.mrb[0].mxu0
    %738 = vdwg.mxu0
    %v739 = vmul.f32 %v736, 0.35355338
    %740 = vrot.lane.b32.xlu0 %v460, 64
    %v741 = vpop.permute.xlu0 %740
    %742 = vrot.lane.b32.xlu0 %v571, 64
    %v743 = vpop.permute.xlu0 %742
    %v744 = vmul.f32 %v349, %v741
    %745 = vmatprep.subr.mxu0 0.0
    %746 = vmatpush1.msra.mxu0 %v577
    %747 = vmatprep.subr.mxu0 0.0
    %748 = vmatpush1.msra.mxu0 %v578
    %749 = vmatprep.subr.mxu0 0.0
    %750 = vmatpush1.msra.mxu0 %v579
    %751 = vmatprep.subr.mxu0 0.0
    %752 = vmatpush1.msra.mxu0 %v580
    %753 = vmatprep.subr.mxu0 0.0
    %754 = vmatpush1.msra.mxu0 %v581
    %755 = vmatprep.subr.mxu0 0.0
    %756 = vmatpush1.msra.mxu0 %v582
    %757 = vmatprep.subr.mxu0 0.0
    %758 = vmatpush1.msra.mxu0 %v583
    %759 = vmatprep.subr.mxu0 0.0
    %760 = vmatpush1.msra.mxu0 %v584
    %761 = vmatprep.subr.mxu0 0.0
    %762 = vmatpush1.msra.mxu0 %v585
    %763 = vmatprep.subr.mxu0 0.0
    %764 = vmatpush1.msra.mxu0 %v586
    %765 = vmatprep.subr.mxu0 0.0
    %766 = vmatpush1.msra.mxu0 %v587
    %767 = vmatprep.subr.mxu0 0.0
    %768 = vmatpush1.msra.mxu0 %v588
    %769 = vmatprep.subr.mxu0 0.0
    %770 = vmatpush1.msra.mxu0 %v589
    %771 = vmatprep.subr.mxu0 0.0
    %772 = vmatpush1.msra.mxu0 %v590
    %773 = vmatprep.subr.mxu0 0.0
    %774 = vmatpush1.msra.mxu0 %v591
    %775 = vmatprep.subr.mxu0 0.0
    %776 = vmatpush1.msra.mxu0 %v592
    %777 = vmatprep.subr.mxu0 0.0
    %778 = vmatpush1.msra.mxu0 0.0
    %779 = vmatprep.subr.mxu0 0.0
    %780 = vmatpush1.msra.mxu0 0.0
    %781 = vmatprep.subr.mxu0 0.0
    %782 = vmatpush1.msra.mxu0 0.0
    %783 = vmatprep.subr.mxu0 0.0
    %784 = vmatpush1.msra.mxu0 0.0
    %785 = vmatprep.subr.mxu0 0.0
    %786 = vmatpush1.msra.mxu0 0.0
    %787 = vmatprep.subr.mxu0 0.0
    %788 = vmatpush1.msra.mxu0 0.0
    %789 = vmatprep.subr.mxu0 0.0
    %790 = vmatpush1.msra.mxu0 0.0
    %791 = vmatprep.subr.mxu0 0.0
    %792 = vmatpush1.msra.mxu0 0.0
    %793 = vmatprep.subr.mxu0 0.0
    %794 = vmatpush1.msra.mxu0 0.0
    %795 = vmatprep.subr.mxu0 0.0
    %796 = vmatpush1.msra.mxu0 0.0
    %797 = vmatprep.subr.mxu0 0.0
    %798 = vmatpush1.msra.mxu0 0.0
    %799 = vmatprep.subr.mxu0 0.0
    %800 = vmatpush1.msra.mxu0 0.0
    %801 = vmatprep.subr.mxu0 0.0
    %802 = vmatpush1.msra.mxu0 0.0
    %803 = vmatprep.subr.mxu0 0.0
    %804 = vmatpush1.msra.mxu0 0.0
    %805 = vmatprep.subr.mxu0 0.0
    %806 = vmatpush1.msra.mxu0 0.0
    %807 = vmatprep.subr.mxu0 0.0
    %808 = vmatpush1.msra.mxu0 0.0
    %809 = vmatprep.mubr.f32.mxu0 0.0
    %810 = vmatmul.mubr.f32.gmra.mrb[0].mxu0 %v744
    %v811 = vpop.f32.mrb[0].mxu0
    %v812 = vadd.f32 0.0, %v811
    %v813 = vpop.f32.mrb[0].mxu0
    %814 = vdwg.mxu0
    %v815 = vmul.f32 %v812, 0.35355338
    %816 = vrot.lane.b32.xlu0 %v460, 96
    %v817 = vpop.permute.xlu0 %816
    %818 = vrot.lane.b32.xlu0 %v571, 96
    %v819 = vpop.permute.xlu0 %818
    %v820 = vmul.f32 %v349, %v817
    %821 = vmatprep.subr.mxu0 0.0
    %822 = vmatpush1.msra.mxu0 %v577
    %823 = vmatprep.subr.mxu0 0.0
    %824 = vmatpush1.msra.mxu0 %v578
    %825 = vmatprep.subr.mxu0 0.0
    %826 = vmatpush1.msra.mxu0 %v579
    %827 = vmatprep.subr.mxu0 0.0
    %828 = vmatpush1.msra.mxu0 %v580
    %829 = vmatprep.subr.mxu0 0.0
    %830 = vmatpush1.msra.mxu0 %v581
    %831 = vmatprep.subr.mxu0 0.0
    %832 = vmatpush1.msra.mxu0 %v582
    %833 = vmatprep.subr.mxu0 0.0
    %834 = vmatpush1.msra.mxu0 %v583
    %835 = vmatprep.subr.mxu0 0.0
    %836 = vmatpush1.msra.mxu0 %v584
    %837 = vmatprep.subr.mxu0 0.0
    %838 = vmatpush1.msra.mxu0 %v585
    %839 = vmatprep.subr.mxu0 0.0
    %840 = vmatpush1.msra.mxu0 %v586
    %841 = vmatprep.subr.mxu0 0.0
    %842 = vmatpush1.msra.mxu0 %v587
    %843 = vmatprep.subr.mxu0 0.0
    %844 = vmatpush1.msra.mxu0 %v588
    %845 = vmatprep.subr.mxu0 0.0
    %846 = vmatpush1.msra.mxu0 %v589
    %847 = vmatprep.subr.mxu0 0.0
    %848 = vmatpush1.msra.mxu0 %v590
    %849 = vmatprep.subr.mxu0 0.0
    %850 = vmatpush1.msra.mxu0 %v591
    %851 = vmatprep.subr.mxu0 0.0
    %852 = vmatpush1.msra.mxu0 %v592
    %853 = vmatprep.subr.mxu0 0.0
    %854 = vmatpush1.msra.mxu0 0.0
    %855 = vmatprep.subr.mxu0 0.0
    %856 = vmatpush1.msra.mxu0 0.0
    %857 = vmatprep.subr.mxu0 0.0
    %858 = vmatpush1.msra.mxu0 0.0
    %859 = vmatprep.subr.mxu0 0.0
    %860 = vmatpush1.msra.mxu0 0.0
    %861 = vmatprep.subr.mxu0 0.0
    %862 = vmatpush1.msra.mxu0 0.0
    %863 = vmatprep.subr.mxu0 0.0
    %864 = vmatpush1.msra.mxu0 0.0
    %865 = vmatprep.subr.mxu0 0.0
    %866 = vmatpush1.msra.mxu0 0.0
    %867 = vmatprep.subr.mxu0 0.0
    %868 = vmatpush1.msra.mxu0 0.0
    %869 = vmatprep.subr.mxu0 0.0
    %870 = vmatpush1.msra.mxu0 0.0
    %871 = vmatprep.subr.mxu0 0.0
    %872 = vmatpush1.msra.mxu0 0.0
    %873 = vmatprep.subr.mxu0 0.0
    %874 = vmatpush1.msra.mxu0 0.0
    %875 = vmatprep.subr.mxu0 0.0
    %876 = vmatpush1.msra.mxu0 0.0
    %877 = vmatprep.subr.mxu0 0.0
    %878 = vmatpush1.msra.mxu0 0.0
    %879 = vmatprep.subr.mxu0 0.0
    %880 = vmatpush1.msra.mxu0 0.0
    %881 = vmatprep.subr.mxu0 0.0
    %882 = vmatpush1.msra.mxu0 0.0
    %883 = vmatprep.subr.mxu0 0.0
    %884 = vmatpush1.msra.mxu0 0.0
    %885 = vmatprep.mubr.f32.mxu0 0.0
    %886 = vmatmul.mubr.f32.gmra.mrb[0].mxu0 %v820
    %v887 = vpop.f32.mrb[0].mxu0
    %v888 = vadd.f32 0.0, %v887
    %v889 = vpop.f32.mrb[0].mxu0
    %890 = vdwg.mxu0
    %v891 = vmul.f32 %v888, 0.35355338
    %v892 = vmax.f32 %v663, %v739
    %v893 = vmax.f32 %v892, %v815
    %v894 = vmax.f32 %v893, %v891
    %v895 = vsub.f32 %v663, %v894
    %v896 = vmul.f32 %v895, 1.442695
    %v897 = vpow.pop %v896
    %v898 = vsub.f32 %v739, %v894
    %v899 = vmul.f32 %v898, 1.442695
    %v900 = vpow.pop %v899
    %v901 = vsub.f32 %v815, %v894
    %v902 = vmul.f32 %v901, 1.442695
    %v903 = vpow.pop %v902
    %v904 = vsub.f32 %v891, %v894
    %v905 = vmul.f32 %v904, 1.442695
    %v906 = vpow.pop %v905
    %v907 = vadd.f32 %v897, %v900
    %v908 = vadd.f32 %v907, %v903
    %v909 = vadd.f32 %v908, %v906
    %v910 = vrcp.pop %v909
    %v911 = vmul.f32 %v897, %v910
    %v912 = vld [vmem:[#allocation13] sm:$0xff]
    %v913 = vld [vmem:[#allocation13 + $0x8] sm:$0xff]
    %vm914 = vcmask 130048
    %v916 = vsel %vm914, %v911, 0
    %918 = vmatprep.subr.mxu0 0.0
    %919 = vmatpush1.msra.mxu0 %v912
    %920 = vmatprep.subr.mxu0 0.0
    %921 = vmatpush1.msra.mxu0 %v913
    %922 = vmatprep.subr.mxu0 0.0
    %923 = vmatpush1.msra.mxu0 0.0
    %924 = vmatprep.subr.mxu0 0.0
    %925 = vmatpush1.msra.mxu0 0.0
    %926 = vmatprep.subr.mxu0 0.0
    %927 = vmatpush1.msra.mxu0 0.0
    %928 = vmatprep.subr.mxu0 0.0
    %929 = vmatpush1.msra.mxu0 0.0
    %930 = vmatprep.subr.mxu0 0.0
    %931 = vmatpush1.msra.mxu0 0.0
    %932 = vmatprep.subr.mxu0 0.0
    %933 = vmatpush1.msra.mxu0 0.0
    %934 = vmatprep.subr.mxu0 0.0
    %935 = vmatpush1.msra.mxu0 0.0
    %936 = vmatprep.subr.mxu0 0.0
    %937 = vmatpush1.msra.mxu0 0.0
    %938 = vmatprep.subr.mxu0 0.0
    %939 = vmatpush1.msra.mxu0 0.0
    %940 = vmatprep.subr.mxu0 0.0
    %941 = vmatpush1.msra.mxu0 0.0
    %942 = vmatprep.subr.mxu0 0.0
    %943 = vmatpush1.msra.mxu0 0.0
    %944 = vmatprep.subr.mxu0 0.0
    %945 = vmatpush1.msra.mxu0 0.0
    %946 = vmatprep.subr.mxu0 0.0
    %947 = vmatpush1.msra.mxu0 0.0
    %948 = vmatprep.subr.mxu0 0.0
    %949 = vmatpush1.msra.mxu0 0.0
    %950 = vmatprep.subr.mxu0 0.0
    %951 = vmatpush1.msra.mxu0 0.0
    %952 = vmatprep.subr.mxu0 0.0
    %953 = vmatpush1.msra.mxu0 0.0
    %954 = vmatprep.subr.mxu0 0.0
    %955 = vmatpush1.msra.mxu0 0.0
    %956 = vmatprep.subr.mxu0 0.0
    %957 = vmatpush1.msra.mxu0 0.0
    %958 = vmatprep.subr.mxu0 0.0
    %959 = vmatpush1.msra.mxu0 0.0
    %960 = vmatprep.subr.mxu0 0.0
    %961 = vmatpush1.msra.mxu0 0.0
    %962 = vmatprep.subr.mxu0 0.0
    %963 = vmatpush1.msra.mxu0 0.0
    %964 = vmatprep.subr.mxu0 0.0
    %965 = vmatpush1.msra.mxu0 0.0
    %966 = vmatprep.subr.mxu0 0.0
    %967 = vmatpush1.msra.mxu0 0.0
    %968 = vmatprep.subr.mxu0 0.0
    %969 = vmatpush1.msra.mxu0 0.0
    %970 = vmatprep.subr.mxu0 0.0
    %971 = vmatpush1.msra.mxu0 0.0
    %972 = vmatprep.subr.mxu0 0.0
    %973 = vmatpush1.msra.mxu0 0.0
    %974 = vmatprep.subr.mxu0 0.0
    %975 = vmatpush1.msra.mxu0 0.0
    %976 = vmatprep.subr.mxu0 0.0
    %977 = vmatpush1.msra.mxu0 0.0
    %978 = vmatprep.subr.mxu0 0.0
    %979 = vmatpush1.msra.mxu0 0.0
    %980 = vmatprep.subr.mxu0 0.0
    %981 = vmatpush1.msra.mxu0 0.0
    %982 = vmatprep.mubr.f32.mxu0 0.0
    %983 = vmatmul.mubr.f32.gmra.mrb[0].mxu0 %v916
    %v984 = vpop.f32.mrb[0].mxu0
    %v985 = vadd.f32 0.0, %v984
    %v986 = vpop.f32.mrb[0].mxu0
    %987 = vdwg.mxu0
    %v988 = vmul.f32 %v985, %v571
    %v989 = vadd.f32 %v988, 0.0
    %v990 = vmul.f32 %v900, %v910
    %v992 = vsel %vm914, %v990, 0
    %994 = vmatprep.subr.mxu0 0.0
    %995 = vmatpush1.msra.mxu0 %v912
    %996 = vmatprep.subr.mxu0 0.0
    %997 = vmatpush1.msra.mxu0 %v913
    %998 = vmatprep.subr.mxu0 0.0
    %999 = vmatpush1.msra.mxu0 0.0
    %1000 = vmatprep.subr.mxu0 0.0
    %1001 = vmatpush1.msra.mxu0 0.0
    %1002 = vmatprep.subr.mxu0 0.0
    %1003 = vmatpush1.msra.mxu0 0.0
    %1004 = vmatprep.subr.mxu0 0.0
    %1005 = vmatpush1.msra.mxu0 0.0
    %1006 = vmatprep.subr.mxu0 0.0
    %1007 = vmatpush1.msra.mxu0 0.0
    %1008 = vmatprep.subr.mxu0 0.0
    %1009 = vmatpush1.msra.mxu0 0.0
    %1010 = vmatprep.subr.mxu0 0.0
    %1011 = vmatpush1.msra.mxu0 0.0
    %1012 = vmatprep.subr.mxu0 0.0
    %1013 = vmatpush1.msra.mxu0 0.0
    %1014 = vmatprep.subr.mxu0 0.0
    %1015 = vmatpush1.msra.mxu0 0.0
    %1016 = vmatprep.subr.mxu0 0.0
    %1017 = vmatpush1.msra.mxu0 0.0
    %1018 = vmatprep.subr.mxu0 0.0
    %1019 = vmatpush1.msra.mxu0 0.0
    %1020 = vmatprep.subr.mxu0 0.0
    %1021 = vmatpush1.msra.mxu0 0.0
    %1022 = vmatprep.subr.mxu0 0.0
    %1023 = vmatpush1.msra.mxu0 0.0
    %1024 = vmatprep.subr.mxu0 0.0
    %1025 = vmatpush1.msra.mxu0 0.0
    %1026 = vmatprep.subr.mxu0 0.0
    %1027 = vmatpush1.msra.mxu0 0.0
    %1028 = vmatprep.subr.mxu0 0.0
    %1029 = vmatpush1.msra.mxu0 0.0
    %1030 = vmatprep.subr.mxu0 0.0
    %1031 = vmatpush1.msra.mxu0 0.0
    %1032 = vmatprep.subr.mxu0 0.0
    %1033 = vmatpush1.msra.mxu0 0.0
    %1034 = vmatprep.subr.mxu0 0.0
    %1035 = vmatpush1.msra.mxu0 0.0
    %1036 = vmatprep.subr.mxu0 0.0
    %1037 = vmatpush1.msra.mxu0 0.0
    %1038 = vmatprep.subr.mxu0 0.0
    %1039 = vmatpush1.msra.mxu0 0.0
    %1040 = vmatprep.subr.mxu0 0.0
    %1041 = vmatpush1.msra.mxu0 0.0
    %1042 = vmatprep.subr.mxu0 0.0
    %1043 = vmatpush1.msra.mxu0 0.0
    %1044 = vmatprep.subr.mxu0 0.0
    %1045 = vmatpush1.msra.mxu0 0.0
    %1046 = vmatprep.subr.mxu0 0.0
    %1047 = vmatpush1.msra.mxu0 0.0
    %1048 = vmatprep.subr.mxu0 0.0
    %1049 = vmatpush1.msra.mxu0 0.0
    %1050 = vmatprep.subr.mxu0 0.0
    %1051 = vmatpush1.msra.mxu0 0.0
    %1052 = vmatprep.subr.mxu0 0.0
    %1053 = vmatpush1.msra.mxu0 0.0
    %1054 = vmatprep.subr.mxu0 0.0
    %1055 = vmatpush1.msra.mxu0 0.0
    %1056 = vmatprep.subr.mxu0 0.0
    %1057 = vmatpush1.msra.mxu0 0.0
    %1058 = vmatprep.mubr.f32.mxu0 0.0
    %1059 = vmatmul.mubr.f32.gmra.mrb[0].mxu0 %v992
    %v1060 = vpop.f32.mrb[0].mxu0
    %v1061 = vadd.f32 0.0, %v1060
    %v1062 = vpop.f32.mrb[0].mxu0
    %1063 = vdwg.mxu0
    %v1064 = vmul.f32 %v1061, %v667
    %v1065 = vadd.f32 %v989, %v1064
    %v1066 = vmul.f32 %v903, %v910
    %v1068 = vsel %vm914, %v1066, 0
    %1070 = vmatprep.subr.mxu0 0.0
    %1071 = vmatpush1.msra.mxu0 %v912
    %1072 = vmatprep.subr.mxu0 0.0
    %1073 = vmatpush1.msra.mxu0 %v913
    %1074 = vmatprep.subr.mxu0 0.0
    %1075 = vmatpush1.msra.mxu0 0.0
    %1076 = vmatprep.subr.mxu0 0.0
    %1077 = vmatpush1.msra.mxu0 0.0
    %1078 = vmatprep.subr.mxu0 0.0
    %1079 = vmatpush1.msra.mxu0 0.0
    %1080 = vmatprep.subr.mxu0 0.0
    %1081 = vmatpush1.msra.mxu0 0.0
    %1082 = vmatprep.subr.mxu0 0.0
    %1083 = vmatpush1.msra.mxu0 0.0
    %1084 = vmatprep.subr.mxu0 0.0
    %1085 = vmatpush1.msra.mxu0 0.0
    %1086 = vmatprep.subr.mxu0 0.0
    %1087 = vmatpush1.msra.mxu0 0.0
    %1088 = vmatprep.subr.mxu0 0.0
    %1089 = vmatpush1.msra.mxu0 0.0
    %1090 = vmatprep.subr.mxu0 0.0
    %1091 = vmatpush1.msra.mxu0 0.0
    %1092 = vmatprep.subr.mxu0 0.0
    %1093 = vmatpush1.msra.mxu0 0.0
    %1094 = vmatprep.subr.mxu0 0.0
    %1095 = vmatpush1.msra.mxu0 0.0
    %1096 = vmatprep.subr.mxu0 0.0
    %1097 = vmatpush1.msra.mxu0 0.0
    %1098 = vmatprep.subr.mxu0 0.0
    %1099 = vmatpush1.msra.mxu0 0.0
    %1100 = vmatprep.subr.mxu0 0.0
    %1101 = vmatpush1.msra.mxu0 0.0
    %1102 = vmatprep.subr.mxu0 0.0
    %1103 = vmatpush1.msra.mxu0 0.0
    %1104 = vmatprep.subr.mxu0 0.0
    %1105 = vmatpush1.msra.mxu0 0.0
    %1106 = vmatprep.subr.mxu0 0.0
    %1107 = vmatpush1.msra.mxu0 0.0
    %1108 = vmatprep.subr.mxu0 0.0
    %1109 = vmatpush1.msra.mxu0 0.0
    %1110 = vmatprep.subr.mxu0 0.0
    %1111 = vmatpush1.msra.mxu0 0.0
    %1112 = vmatprep.subr.mxu0 0.0
    %1113 = vmatpush1.msra.mxu0 0.0
    %1114 = vmatprep.subr.mxu0 0.0
    %1115 = vmatpush1.msra.mxu0 0.0
    %1116 = vmatprep.subr.mxu0 0.0
    %1117 = vmatpush1.msra.mxu0 0.0
    %1118 = vmatprep.subr.mxu0 0.0
    %1119 = vmatpush1.msra.mxu0 0.0
    %1120 = vmatprep.subr.mxu0 0.0
    %1121 = vmatpush1.msra.mxu0 0.0
    %1122 = vmatprep.subr.mxu0 0.0
    %1123 = vmatpush1.msra.mxu0 0.0
    %1124 = vmatprep.subr.mxu0 0.0
    %1125 = vmatpush1.msra.mxu0 0.0
    %1126 = vmatprep.subr.mxu0 0.0
    %1127 = vmatpush1.msra.mxu0 0.0
    %1128 = vmatprep.subr.mxu0 0.0
    %1129 = vmatpush1.msra.mxu0 0.0
    %1130 = vmatprep.subr.mxu0 0.0
    %1131 = vmatpush1.msra.mxu0 0.0
    %1132 = vmatprep.subr.mxu0 0.0
    %1133 = vmatpush1.msra.mxu0 0.0
    %1134 = vmatprep.mubr.f32.mxu0 0.0
    %1135 = vmatmul.mubr.f32.gmra.mrb[0].mxu0 %v1068
    %v1136 = vpop.f32.mrb[0].mxu0
    %v1137 = vadd.f32 0.0, %v1136
    %v1138 = vpop.f32.mrb[0].mxu0
    %1139 = vdwg.mxu0
    %v1140 = vmul.f32 %v1137, %v743
    %v1141 = vadd.f32 %v1065, %v1140
    %v1142 = vmul.f32 %v906, %v910
    %v1144 = vsel %vm914, %v1142, 0
    %1146 = vmatprep.subr.mxu0 0.0
    %1147 = vmatpush1.msra.mxu0 %v912
    %1148 = vmatprep.subr.mxu0 0.0
    %1149 = vmatpush1.msra.mxu0 %v913
    %1150 = vmatprep.subr.mxu0 0.0
    %1151 = vmatpush1.msra.mxu0 0.0
    %1152 = vmatprep.subr.mxu0 0.0
    %1153 = vmatpush1.msra.mxu0 0.0
    %1154 = vmatprep.subr.mxu0 0.0
    %1155 = vmatpush1.msra.mxu0 0.0
    %1156 = vmatprep.subr.mxu0 0.0
    %1157 = vmatpush1.msra.mxu0 0.0
    %1158 = vmatprep.subr.mxu0 0.0
    %1159 = vmatpush1.msra.mxu0 0.0
    %1160 = vmatprep.subr.mxu0 0.0
    %1161 = vmatpush1.msra.mxu0 0.0
    %1162 = vmatprep.subr.mxu0 0.0
    %1163 = vmatpush1.msra.mxu0 0.0
    %1164 = vmatprep.subr.mxu0 0.0
    %1165 = vmatpush1.msra.mxu0 0.0
    %1166 = vmatprep.subr.mxu0 0.0
    %1167 = vmatpush1.msra.mxu0 0.0
    %1168 = vmatprep.subr.mxu0 0.0
    %1169 = vmatpush1.msra.mxu0 0.0
    %1170 = vmatprep.subr.mxu0 0.0
    %1171 = vmatpush1.msra.mxu0 0.0
    %1172 = vmatprep.subr.mxu0 0.0
    %1173 = vmatpush1.msra.mxu0 0.0
    %1174 = vmatprep.subr.mxu0 0.0
    %1175 = vmatpush1.msra.mxu0 0.0
    %1176 = vmatprep.subr.mxu0 0.0
    %1177 = vmatpush1.msra.mxu0 0.0
    %1178 = vmatprep.subr.mxu0 0.0
    %1179 = vmatpush1.msra.mxu0 0.0
    %1180 = vmatprep.subr.mxu0 0.0
    %1181 = vmatpush1.msra.mxu0 0.0
    %1182 = vmatprep.subr.mxu0 0.0
    %1183 = vmatpush1.msra.mxu0 0.0
    %1184 = vmatprep.subr.mxu0 0.0
    %1185 = vmatpush1.msra.mxu0 0.0
    %1186 = vmatprep.subr.mxu0 0.0
    %1187 = vmatpush1.msra.mxu0 0.0
    %1188 = vmatprep.subr.mxu0 0.0
    %1189 = vmatpush1.msra.mxu0 0.0
    %1190 = vmatprep.subr.mxu0 0.0
    %1191 = vmatpush1.msra.mxu0 0.0
    %1192 = vmatprep.subr.mxu0 0.0
    %1193 = vmatpush1.msra.mxu0 0.0
    %1194 = vmatprep.subr.mxu0 0.0
    %1195 = vmatpush1.msra.mxu0 0.0
    %1196 = vmatprep.subr.mxu0 0.0
    %1197 = vmatpush1.msra.mxu0 0.0
    %1198 = vmatprep.subr.mxu0 0.0
    %1199 = vmatpush1.msra.mxu0 0.0
    %1200 = vmatprep.subr.mxu0 0.0
    %1201 = vmatpush1.msra.mxu0 0.0
    %1202 = vmatprep.subr.mxu0 0.0
    %1203 = vmatpush1.msra.mxu0 0.0
    %1204 = vmatprep.subr.mxu0 0.0
    %1205 = vmatpush1.msra.mxu0 0.0
    %1206 = vmatprep.subr.mxu0 0.0
    %1207 = vmatpush1.msra.mxu0 0.0
    %1208 = vmatprep.subr.mxu0 0.0
    %1209 = vmatpush1.msra.mxu0 0.0
    %1210 = vmatprep.mubr.f32.mxu0 0.0
    %1211 = vmatmul.mubr.f32.gmra.mrb[0].mxu0 %v1144
    %v1212 = vpop.f32.mrb[0].mxu0
    %v1213 = vadd.f32 0.0, %v1212
    %v1214 = vpop.f32.mrb[0].mxu0
    %1215 = vdwg.mxu0
    %v1216 = vmul.f32 %v1213, %v819
    %v1217 = vadd.f32 %v1141, %v1216
    %v1218 = vpack.c.bf16 %v1217, %v1217
    %v1219 = vld [vmem:[%s9] sm:$0xf]
    %v1220 = vld [vmem:[%s9 + $0x4] sm:$0xf]
    %v1221 = vld [vmem:[%s9 + $0x8] sm:$0xf]
    %v1222 = vld [vmem:[%s9 + $0xc] sm:$0xf]
    %v1223 = vld [vmem:[%s9 + $0x10] sm:$0xf]
    %v1224 = vld [vmem:[%s9 + $0x14] sm:$0xf]
    %v1225 = vld [vmem:[%s9 + $0x18] sm:$0xf]
    %v1226 = vld [vmem:[%s9 + $0x1c] sm:$0xf]
    %v1227 = vld [vmem:[%s9 + $0x20] sm:$0xf]
    %v1228 = vld [vmem:[%s9 + $0x24] sm:$0xf]
    %v1229 = vld [vmem:[%s9 + $0x28] sm:$0xf]
    %v1230 = vld [vmem:[%s9 + $0x2c] sm:$0xf]
    %v1231 = vld [vmem:[%s9 + $0x30] sm:$0xf]
    %v1232 = vld [vmem:[%s9 + $0x34] sm:$0xf]
    %v1233 = vld [vmem:[%s9 + $0x38] sm:$0xf]
    %v1234 = vld [vmem:[%s9 + $0x3c] sm:$0xf]
    %v1235 = vld [vmem:[#allocation11] sm:$0x1]
    %v1237 = vlaneseq
    %v1238 = vshrl.u32 %v1237, 7
    %v1239 = vsub.s32 0, %v1238
    %v1240 = vrot.slane %v1235, %v1239
    %v1258 = vunpack.c.l.b16 %v1219
    %v1259 = vunpack.c.l.b16 %v1220
    %v1260 = vunpack.c.l.b16 %v1221
    %v1261 = vunpack.c.l.b16 %v1222
    %v1262 = vunpack.c.l.b16 %v1223
    %v1263 = vunpack.c.l.b16 %v1224
    %v1264 = vunpack.c.l.b16 %v1225
    %v1265 = vunpack.c.l.b16 %v1226
    %v1266 = vunpack.c.l.b16 %v1227
    %v1267 = vunpack.c.l.b16 %v1228
    %v1268 = vunpack.c.l.b16 %v1229
    %v1269 = vunpack.c.l.b16 %v1230
    %v1270 = vunpack.c.l.b16 %v1231
    %v1271 = vunpack.c.l.b16 %v1232
    %v1272 = vunpack.c.l.b16 %v1233
    %v1273 = vunpack.c.l.b16 %v1234
    %v1274 = vpack.c.b16 %v1259, %v1258
    %v1275 = vpack.c.b16 %v1261, %v1260
    %v1276 = vpack.c.b16 %v1263, %v1262
    %v1277 = vpack.c.b16 %v1265, %v1264
    %v1278 = vpack.c.b16 %v1267, %v1266
    %v1279 = vpack.c.b16 %v1269, %v1268
    %v1280 = vpack.c.b16 %v1271, %v1270
    %v1281 = vpack.c.b16 %v1273, %v1272
    %1290 = vmatprep.subr.bf16.mxu0 0
    %1291 = vmatpush1.bf16.msra.mxu0 %v1274
    %1292 = vmatprep.subr.bf16.mxu0 0
    %1293 = vmatpush1.bf16.msra.mxu0 %v1275
    %1294 = vmatprep.subr.bf16.mxu0 0
    %1295 = vmatpush1.bf16.msra.mxu0 %v1276
    %1296 = vmatprep.subr.bf16.mxu0 0
    %1297 = vmatpush1.bf16.msra.mxu0 %v1277
    %1298 = vmatprep.subr.bf16.mxu0 0
    %1299 = vmatpush1.bf16.msra.mxu0 %v1278
    %1300 = vmatprep.subr.bf16.mxu0 0
    %1301 = vmatpush1.bf16.msra.mxu0 %v1279
    %1302 = vmatprep.subr.bf16.mxu0 0
    %1303 = vmatpush1.bf16.msra.mxu0 %v1280
    %1304 = vmatprep.subr.bf16.mxu0 0
    %1305 = vmatpush1.bf16.msra.mxu0 %v1281
    %1306 = vmatprep.subr.bf16.mxu0 0
    %1307 = vmatpush1.bf16.msra.mxu0 0
    %1308 = vmatprep.subr.bf16.mxu0 0
    %1309 = vmatpush1.bf16.msra.mxu0 0
    %1310 = vmatprep.subr.bf16.mxu0 0
    %1311 = vmatpush1.bf16.msra.mxu0 0
    %1312 = vmatprep.subr.bf16.mxu0 0
    %1313 = vmatpush1.bf16.msra.mxu0 0
    %1314 = vmatprep.subr.bf16.mxu0 0
    %1315 = vmatpush1.bf16.msra.mxu0 0
    %1316 = vmatprep.subr.bf16.mxu0 0
    %1317 = vmatpush1.bf16.msra.mxu0 0
    %1318 = vmatprep.subr.bf16.mxu0 0
    %1319 = vmatpush1.bf16.msra.mxu0 0
    %1320 = vmatprep.subr.bf16.mxu0 0
    %1321 = vmatpush1.bf16.msra.mxu0 0
    %1322 = vmatprep.mubr.bf16.mxu0 0
    %1323 = vmatmul.mubr.bf16.gmra.mrb[0].mxu0 %v1218
    %v1324 = vpop.f32.mrb[0].mxu0
    %v1325 = vadd.f32 %v1240, %v1324
    %v1326 = vpop.f32.mrb[0].mxu0
    %v1327 = vpop.f32.mrb[0].mxu0
    %v1328 = vpop.f32.mrb[0].mxu0
    %1329 = vdwg.mxu0
    %v1330 = vadd.f32 %v241, %v1325
    %v1331 = vpack.c.bf16 %v1330, %v1330
    %v1332 = vld [vmem:[%s13] sm:$0xf]
    %v1333 = vld [vmem:[%s13 + $0x4] sm:$0xf]
    %v1334 = vld [vmem:[%s13 + $0x8] sm:$0xf]
    %v1335 = vld [vmem:[%s13 + $0xc] sm:$0xf]
    %v1336 = vld [vmem:[%s13 + $0x10] sm:$0xf]
    %v1337 = vld [vmem:[%s13 + $0x14] sm:$0xf]
    %v1338 = vld [vmem:[%s13 + $0x18] sm:$0xf]
    %v1339 = vld [vmem:[%s13 + $0x1c] sm:$0xf]
    %v1340 = vld [vmem:[%s13 + $0x20] sm:$0xf]
    %v1341 = vld [vmem:[%s13 + $0x24] sm:$0xf]
    %v1342 = vld [vmem:[%s13 + $0x28] sm:$0xf]
    %v1343 = vld [vmem:[%s13 + $0x2c] sm:$0xf]
    %v1344 = vld [vmem:[%s13 + $0x30] sm:$0xf]
    %v1345 = vld [vmem:[%s13 + $0x34] sm:$0xf]
    %v1346 = vld [vmem:[%s13 + $0x38] sm:$0xf]
    %v1347 = vld [vmem:[%s13 + $0x3c] sm:$0xf]
    %v1348 = vld [vmem:[%s14] sm:$0x1]
    %v1350 = vlaneseq
    %v1351 = vshrl.u32 %v1350, 7
    %v1352 = vsub.s32 0, %v1351
    %v1353 = vrot.slane %v1348, %v1352
    %v1371 = vunpack.c.l.b16 %v1332
    %v1372 = vunpack.c.l.b16 %v1333
    %v1373 = vunpack.c.l.b16 %v1334
    %v1374 = vunpack.c.l.b16 %v1335
    %v1375 = vunpack.c.l.b16 %v1336
    %v1376 = vunpack.c.l.b16 %v1337
    %v1377 = vunpack.c.l.b16 %v1338
    %v1378 = vunpack.c.l.b16 %v1339
    %v1379 = vunpack.c.l.b16 %v1340
    %v1380 = vunpack.c.l.b16 %v1341
    %v1381 = vunpack.c.l.b16 %v1342
    %v1382 = vunpack.c.l.b16 %v1343
    %v1383 = vunpack.c.l.b16 %v1344
    %v1384 = vunpack.c.l.b16 %v1345
    %v1385 = vunpack.c.l.b16 %v1346
    %v1386 = vunpack.c.l.b16 %v1347
    %v1387 = vpack.c.b16 %v1372, %v1371
    %v1388 = vpack.c.b16 %v1374, %v1373
    %v1389 = vpack.c.b16 %v1376, %v1375
    %v1390 = vpack.c.b16 %v1378, %v1377
    %v1391 = vpack.c.b16 %v1380, %v1379
    %v1392 = vpack.c.b16 %v1382, %v1381
    %v1393 = vpack.c.b16 %v1384, %v1383
    %v1394 = vpack.c.b16 %v1386, %v1385
    %1403 = vmatprep.subr.bf16.mxu0 0
    %1404 = vmatpush1.bf16.msra.mxu0 %v1387
    %1405 = vmatprep.subr.bf16.mxu0 0
    %1406 = vmatpush1.bf16.msra.mxu0 %v1388
    %1407 = vmatprep.subr.bf16.mxu0 0
    %1408 = vmatpush1.bf16.msra.mxu0 %v1389
    %1409 = vmatprep.subr.bf16.mxu0 0
    %1410 = vmatpush1.bf16.msra.mxu0 %v1390
    %1411 = vmatprep.subr.bf16.mxu0 0
    %1412 = vmatpush1.bf16.msra.mxu0 %v1391
    %1413 = vmatprep.subr.bf16.mxu0 0
    %1414 = vmatpush1.bf16.msra.mxu0 %v1392
    %1415 = vmatprep.subr.bf16.mxu0 0
    %1416 = vmatpush1.bf16.msra.mxu0 %v1393
    %1417 = vmatprep.subr.bf16.mxu0 0
    %1418 = vmatpush1.bf16.msra.mxu0 %v1394
    %1419 = vmatprep.subr.bf16.mxu0 0
    %1420 = vmatpush1.bf16.msra.mxu0 0
    %1421 = vmatprep.subr.bf16.mxu0 0
    %1422 = vmatpush1.bf16.msra.mxu0 0
    %1423 = vmatprep.subr.bf16.mxu0 0
    %1424 = vmatpush1.bf16.msra.mxu0 0
    %1425 = vmatprep.subr.bf16.mxu0 0
    %1426 = vmatpush1.bf16.msra.mxu0 0
    %1427 = vmatprep.subr.bf16.mxu0 0
    %1428 = vmatpush1.bf16.msra.mxu0 0
    %1429 = vmatprep.subr.bf16.mxu0 0
    %1430 = vmatpush1.bf16.msra.mxu0 0
    %1431 = vmatprep.subr.bf16.mxu0 0
    %1432 = vmatpush1.bf16.msra.mxu0 0
    %1433 = vmatprep.subr.bf16.mxu0 0
    %1434 = vmatpush1.bf16.msra.mxu0 0
    %1435 = vmatprep.mubr.bf16.mxu0 0
    %1436 = vmatmul.mubr.bf16.gmra.mrb[0].mxu0 %v1331
    %v1437 = vpop.f32.mrb[0].mxu0
    %v1438 = vadd.f32 %v1353, %v1437
    %v1439 = vpop.f32.mrb[0].mxu0
    %v1440 = vpop.f32.mrb[0].mxu0
    %v1441 = vpop.f32.mrb[0].mxu0
    %1442 = vdwg.mxu0
    %v1443 = vmax.f32 %v1438, 0.0
    %v1444 = vpack.c.bf16 %v1443, %v1443
    %v1445 = vld [vmem:[#allocation14] sm:$0xf]
    %v1446 = vld [vmem:[#allocation14 + $0x4] sm:$0xf]
    %v1447 = vld [vmem:[#allocation14 + $0x8] sm:$0xf]
    %v1448 = vld [vmem:[#allocation14 + $0xc] sm:$0xf]
    %v1449 = vld [vmem:[%s16] sm:$0x1]
    %v1451 = vlaneseq
    %v1452 = vshrl.u32 %v1451, 7
    %v1453 = vsub.s32 0, %v1452
    %v1454 = vrot.slane %v1449, %v1453
    %v1460 = vunpack.c.l.b16 %v1445
    %v1461 = vunpack.c.l.b16 %v1446
    %v1462 = vunpack.c.l.b16 %v1447
    %v1463 = vunpack.c.l.b16 %v1448
    %v1464 = vpack.c.b16 %v1461, %v1460
    %v1465 = vpack.c.b16 %v1463, %v1462
    %vm1468 = vcmask 261120
    %v1470 = vsel %vm1468, %v1444, 0
    %1472 = vmatprep.subr.bf16.mxu0 0
    %1473 = vmatpush1.bf16.msra.mxu0 %v1464
    %1474 = vmatprep.subr.bf16.mxu0 0
    %1475 = vmatpush1.bf16.msra.mxu0 %v1465
    %1476 = vmatprep.subr.bf16.mxu0 0
    %1477 = vmatpush1.bf16.msra.mxu0 0
    %1478 = vmatprep.subr.bf16.mxu0 0
    %1479 = vmatpush1.bf16.msra.mxu0 0
    %1480 = vmatprep.subr.bf16.mxu0 0
    %1481 = vmatpush1.bf16.msra.mxu0 0
    %1482 = vmatprep.subr.bf16.mxu0 0
    %1483 = vmatpush1.bf16.msra.mxu0 0
    %1484 = vmatprep.subr.bf16.mxu0 0
    %1485 = vmatpush1.bf16.msra.mxu0 0
    %1486 = vmatprep.subr.bf16.mxu0 0
    %1487 = vmatpush1.bf16.msra.mxu0 0
    %1488 = vmatprep.subr.bf16.mxu0 0
    %1489 = vmatpush1.bf16.msra.mxu0 0
    %1490 = vmatprep.subr.bf16.mxu0 0
    %1491 = vmatpush1.bf16.msra.mxu0 0
    %1492 = vmatprep.subr.bf16.mxu0 0
    %1493 = vmatpush1.bf16.msra.mxu0 0
    %1494 = vmatprep.subr.bf16.mxu0 0
    %1495 = vmatpush1.bf16.msra.mxu0 0
    %1496 = vmatprep.subr.bf16.mxu0 0
    %1497 = vmatpush1.bf16.msra.mxu0 0
    %1498 = vmatprep.subr.bf16.mxu0 0
    %1499 = vmatpush1.bf16.msra.mxu0 0
    %1500 = vmatprep.subr.bf16.mxu0 0
    %1501 = vmatpush1.bf16.msra.mxu0 0
    %1502 = vmatprep.subr.bf16.mxu0 0
    %1503 = vmatpush1.bf16.msra.mxu0 0
    %1504 = vmatprep.mubr.bf16.mxu0 0
    %1505 = vmatmul.mubr.bf16.gmra.mrb[0].mxu0 %v1470
    %v1506 = vpop.f32.mrb[0].mxu0
    %v1507 = vadd.f32 %v1454, %v1506
    %v1508 = vpop.f32.mrb[0].mxu0
    %v1509 = vpop.f32.mrb[0].mxu0
    %v1510 = vpop.f32.mrb[0].mxu0
    %1511 = vdwg.mxu0
    %1512 = vst [vmem:[#allocation16] sm:$0xff] %v1507
    // Predicated region
    $region102: #{tpu_custom_call.1} parent=1 // pred_check
      _
    $region103: #{tpu_custom_call.1} parent=1 // pred_check_branch
      %1514 = sbr.rel (0) target = $region105
    $region104: #{tpu_custom_call.1} parent=1 // pred_region
      %s1516 = ssub.s32 128, 128
      %1517 = vsyncadd [#allocation4], %s1516
      %s1519 = sshll.u32 [#allocation16], 4
      %s1520 = int_to_ptr.vmem [resolvable:$true] %s1519
      %1522 = dma.vmem_to_hbm [thread:$0]  %s1520, 128, %s17, [#allocation4]
    $region105: #{tpu_custom_call.1} parent=1 // pred_fallthru
      _
    // Predicated region
    $region106: #{tpu_custom_call.1} parent=1 // pred_check
      _
    $region107: #{tpu_custom_call.1} parent=1 // pred_check_branch
      %1524 = sbr.rel (0) target = $region109
    $region108: #{tpu_custom_call.1} parent=1 // pred_region
      %1525 = dma.done [#allocation4], 128
    $region109: #{tpu_custom_call.1} parent=1 // pred_fallthru
      _
    %1526 = vsyncpa [#allocation3], 1
    %1527 = vsyncpa [#allocation6], 1
    %1528 = vsyncpa [#allocation9], 1
    %1529 = vsyncpa [#allocation12], 1
    %1530 = vsyncpa [#allocation15], 1
    %1531 = vsyncpa [#allocation4], 1

</llo_original>
